<compile_context>
chip_gen: v5e
topology: v5e:2x2
jax: 0.10.0
libtpu: 0.0.40
codegen_flags: <defaults>
</compile_context>

<pallas_src>
import functools

import jax
import jax.numpy as jnp
from jax.experimental import pallas as pl
from jax.experimental.pallas import tpu as pltpu


def _twinbert_head_kernel(q_ref, d_ref, wres_ref, bres_ref, wcls_ref, bcls_ref,
                          score_ref, feat_ref, qsum_ref, dsum_ref, *, inv_len):
    li = pl.program_id(1)

    @pl.when(li == 0)
    def _():
        qsum_ref[...] = jnp.zeros_like(qsum_ref)
        dsum_ref[...] = jnp.zeros_like(dsum_ref)

    # Accumulate the sequence-axis sums in f32 (upcast first: v5e has no bf16 VPU).
    qsum_ref[...] += jnp.sum(q_ref[...].astype(jnp.float32), axis=1)
    dsum_ref[...] += jnp.sum(d_ref[...].astype(jnp.float32), axis=1)

    @pl.when(li == pl.num_programs(1) - 1)
    def _():
        # max(a, b) / L == max(a / L, b / L) for L > 0: fold 1/L into one scale.
        x = jnp.maximum(qsum_ref[...], dsum_ref[...]) * inv_len        # [TB, H] f32

        # res: Linear(H, H) + residual.  MXU in the streaming dtype, f32 accumulate.
        feature = (jnp.dot(x.astype(wres_ref.dtype), wres_ref[...],
                           preferred_element_type=jnp.float32)
                   + bres_ref[...] + x)                                # [TB, H] f32

        # cls: Linear(H, 1) as a VPU multiply + lane reduce -- keeps the MXU out
        # of an N=1 matvec that would serialize behind the res matmul.
        score = (jnp.sum(feature * wcls_ref[...], axis=-1, keepdims=True)
                 + bcls_ref[0, 0])                                     # [TB, 1]

        feat_ref[...] = feature.astype(feat_ref.dtype)
        score_ref[...] = score.astype(score_ref.dtype)


def _choose_tiles(B, L, H, compute_bytes):
    # Batch tile: whole batch when small, else 64 rows (multiple of 8).
    tb = B if B <= 64 else 64
    # Sequence tile: keep each streamed q/d tile around <= 2 MiB so that
    # 2 inputs x 2 pipeline buffers stay well under v7x's scoped VMEM default.
    budget = 2 * 1024 * 1024
    tl = max(8, budget // max(1, tb * H * compute_bytes))
    if tl >= L:
        tl = L
    else:
        tl = max(8, (tl // 8) * 8)
    return tb, tl


def twinbert_head(q_rep, d_rep, w_res, b_res, w_cls, b_cls,
                  *, compute_dtype=jnp.bfloat16, tb=None, tl=None):
    """TwinBertRanker.forward_without_bert head.

    q_rep, d_rep : [B, L, H] last-layer hidden states.
    w_res        : [H, H] res weight stored as [in, out] (== PyTorch weight.T).
    b_res        : [H];  w_cls : [H, 1] ([in, out]);  b_cls : [1].
    Returns (score [B, 1] f32, feature [B, H] f32).
    """
    B, L, H = q_rep.shape
    assert d_rep.shape == (B, L, H)
    cbytes = jnp.dtype(compute_dtype).itemsize

    tb_d, tl_d = _choose_tiles(B, L, H, cbytes)
    tb = tb if tb is not None else tb_d
    tl = tl if tl is not None else tl_d

    Bp = pl.cdiv(B, tb) * tb
    Lp = pl.cdiv(L, tl) * tl

    q = q_rep.astype(compute_dtype)
    d = d_rep.astype(compute_dtype)
    if (Bp, Lp) != (B, L):
        # Zero padding: padded sequence rows add 0 to the sums (mean divides by
        # the TRUE L); padded batch rows are sliced off below.
        pad = ((0, Bp - B), (0, Lp - L), (0, 0))
        q = jnp.pad(q, pad)
        d = jnp.pad(d, pad)

    wres = w_res.astype(compute_dtype)                 # [H, H], VMEM-resident
    bres = b_res.reshape(1, H).astype(jnp.float32)     # [1, H]
    wcls = w_cls.reshape(1, H).astype(jnp.float32)     # [1, H] row for the VPU
    bcls = b_cls.reshape(1, 1).astype(jnp.float32)     # SMEM scalar

    grid = (Bp // tb, Lp // tl)
    kernel = functools.partial(_twinbert_head_kernel, inv_len=float(1.0 / L))

    # Roofline hint for XLA: this kernel is HBM-bound on the 2*B*L*H stream.
    cost = pl.CostEstimate(
        flops=2 * B * H * H + 4 * B * L * H,
        transcendentals=0,
        bytes_accessed=(2 * Bp * Lp * H * cbytes + H * H * cbytes
                        + Bp * H * 4 + Bp * 4),
    )

    in_tile = tb * tl * H * cbytes
    vmem_need = (4 * in_tile                     # q, d double-buffered
                 + H * H * cbytes + 2 * H * 4    # resident weights / biases
                 + 2 * (tb * H * 4 + tb * 4)     # outputs, double-buffered
                 + 2 * tb * H * 4)               # f32 sum scratch
    vmem_limit = int(min(max(2 * vmem_need, 32 * 1024 * 1024), 64 * 1024 * 1024))

    grid_spec = pltpu.PrefetchScalarGridSpec(
        num_scalar_prefetch=0,
        grid=grid,
        in_specs=[
            pl.BlockSpec((tb, tl, H), lambda b, l: (b, l, 0)),      # q stream
            pl.BlockSpec((tb, tl, H), lambda b, l: (b, l, 0)),      # d stream
            pl.BlockSpec((H, H), lambda b, l: (0, 0)),              # w_res (resident)
            pl.BlockSpec((1, H), lambda b, l: (0, 0)),              # b_res
            pl.BlockSpec((1, H), lambda b, l: (0, 0)),              # w_cls row
            pl.BlockSpec(memory_space=pltpu.MemorySpace.SMEM),      # b_cls scalar
        ],
        out_specs=(
            pl.BlockSpec((tb, 1), lambda b, l: (b, 0)),             # score
            pl.BlockSpec((tb, H), lambda b, l: (b, 0)),             # feature
        ),
        scratch_shapes=[pltpu.VMEM((tb, H), jnp.float32),
                        pltpu.VMEM((tb, H), jnp.float32)],
    )

    score, feature = pl.pallas_call(
        kernel,
        out_shape=(jax.ShapeDtypeStruct((Bp, 1), jnp.float32),
                   jax.ShapeDtypeStruct((Bp, H), jnp.float32)),
        grid_spec=grid_spec,
        compiler_params=pltpu.CompilerParams(
            dimension_semantics=("parallel", "arbitrary"),
            vmem_limit_bytes=vmem_limit),
        cost_estimate=cost,
    )(q, d, wres, bres, wcls, bcls)

    if Bp != B:
        score = score[:B]
        feature = feature[:B]
    return score, feature


def reference(q_rep, d_rep, w_res, b_res, w_cls, b_cls):
    x1 = jnp.mean(q_rep, axis=1)
    x2 = jnp.mean(d_rep, axis=1)
    x = jnp.maximum(x1, x2)
    feature = jnp.dot(x, w_res, precision=jax.lax.Precision.HIGHEST) + b_res + x
    score = jnp.dot(feature, w_cls, precision=jax.lax.Precision.HIGHEST) + b_cls
    return score, feature


if __name__ == "__main__":
    # bert-base geometry (BERT_SIZE = 768), small batch / seq.
    B, L, H = 2, 8, 768

    key = jax.random.PRNGKey(0)
    k_q, k_d, k_wr, k_br, k_wc, k_bc = jax.random.split(key, 6)

    q_rep = jax.random.normal(k_q, (B, L, H), dtype=jnp.float32)
    d_rep = jax.random.normal(k_d, (B, L, H), dtype=jnp.float32)
    # Linear params stored [in, out] so the kernel does x @ W + b (== x @ W.T + b in torch).
    w_res = jax.random.normal(k_wr, (H, H), dtype=jnp.float32) * 0.02
    b_res = jax.random.normal(k_br, (H,), dtype=jnp.float32) * 0.02
    w_cls = jax.random.normal(k_wc, (H, 1), dtype=jnp.float32) * 0.02
    b_cls = jax.random.normal(k_bc, (1,), dtype=jnp.float32) * 0.02

    ref_score, ref_feature = reference(q_rep, d_rep, w_res, b_res, w_cls, b_cls)

    # f32 path (tight check).
    score, feature = twinbert_head(q_rep, d_rep, w_res, b_res, w_cls, b_cls,
                                   compute_dtype=jnp.float32)
    jax.block_until_ready((score, feature))
    assert jnp.allclose(score, ref_score, atol=1e-3, rtol=1e-3)
    assert jnp.allclose(feature, ref_feature, atol=1e-3, rtol=1e-3)

    # Default bf16 streaming path (halved HBM traffic, f32 accumulation).
    score_bf, feature_bf = twinbert_head(q_rep, d_rep, w_res, b_res, w_cls, b_cls)
    jax.block_until_ready((score_bf, feature_bf))
    assert jnp.allclose(score_bf, ref_score, atol=3e-2, rtol=3e-2)
    assert jnp.allclose(feature_bf, ref_feature, atol=3e-2, rtol=3e-2)

    # Larger shape that exercises the (B, L) grid, L padding and the multi-step
    # sequence reduction.
    B2, L2 = 16, 200
    kq2, kd2 = jax.random.split(jax.random.PRNGKey(1), 2)
    q2 = jax.random.normal(kq2, (B2, L2, H), dtype=jnp.float32)
    d2 = jax.random.normal(kd2, (B2, L2, H), dtype=jnp.float32)
    s2, f2 = twinbert_head(q2, d2, w_res, b_res, w_cls, b_cls,
                           compute_dtype=jnp.bfloat16, tb=16, tl=64)
    jax.block_until_ready((s2, f2))
    rs2, rf2 = reference(q2, d2, w_res, b_res, w_cls, b_cls)
    assert jnp.allclose(s2, rs2, atol=3e-2, rtol=3e-2)
    assert jnp.allclose(f2, rf2, atol=3e-2, rtol=3e-2)

    print("KERNEL_OK")
</pallas_src>

<mosaic_0001>
module attributes {stable_mosaic.version = 11 : i64} {
  func.func @_twinbert_head_kernel(%arg0: i32, %arg1: i32, %arg2: memref<2x8x768xf32, #tpu.memory_space<vmem>>, %arg3: memref<2x8x768xf32, #tpu.memory_space<vmem>>, %arg4: memref<768x768xf32, #tpu.memory_space<vmem>>, %arg5: memref<1x768xf32, #tpu.memory_space<vmem>>, %arg6: memref<1x768xf32, #tpu.memory_space<vmem>>, %arg7: memref<1x1xf32, #tpu.memory_space<smem>>, %arg8: memref<2x1xf32, #tpu.memory_space<vmem>>, %arg9: memref<2x768xf32, #tpu.memory_space<vmem>>, %arg10: memref<2x768xf32, #tpu.memory_space<vmem>>, %arg11: memref<2x768xf32, #tpu.memory_space<vmem>>) attributes {dimension_semantics = [#tpu.dimension_semantics<parallel>, #tpu.dimension_semantics<arbitrary>], iteration_bounds = array<i64: 1, 1>, scalar_prefetch = 0 : i64, scratch_operands = 2 : i64, tpu.core_type = #tpu.core_type<tc>, window_params = [{transform_indices = @transform_0, window_bounds = array<i64: 2, 8, 768>}, {transform_indices = @transform_1, window_bounds = array<i64: 2, 8, 768>}, {pipeline_mode = #tpu.pipeline_mode<synchronous>, transform_indices = @transform_2, window_bounds = array<i64: 768, 768>}, {pipeline_mode = #tpu.pipeline_mode<synchronous>, transform_indices = @transform_3, window_bounds = array<i64: 1, 768>}, {pipeline_mode = #tpu.pipeline_mode<synchronous>, transform_indices = @transform_4, window_bounds = array<i64: 1, 768>}, {transform_indices = @transform_5, window_bounds = array<i64: 1, 1>}, {transform_indices = @transform_6, window_bounds = array<i64: 2, 1>}, {transform_indices = @transform_7, window_bounds = array<i64: 2, 768>}]} {
    %c0_i32 = arith.constant 0 : i32
    %0 = arith.cmpi eq, %arg1, %c0_i32 : i32
    %1 = arith.extui %0 : i1 to i32
    %c0_i32_0 = arith.constant 0 : i32
    %2 = arith.cmpi ne, %1, %c0_i32_0 : i32
    scf.if %2 {
      %cst_17 = arith.constant 0.000000e+00 : f32
      %16 = vector.broadcast %cst_17 : f32 to vector<2x768xf32>
      %c0_18 = arith.constant 0 : index
      %c0_19 = arith.constant 0 : index
      %17 = vector.load %arg10[%c0_18, %c0_19] : memref<2x768xf32, #tpu.memory_space<vmem>>, vector<2x768xf32>
      tpu.vector_store %arg10[%c0_18, %c0_19], %16 {strides = array<i32>} : memref<2x768xf32, #tpu.memory_space<vmem>>, vector<2x768xf32>,
      %cst_20 = arith.constant 0.000000e+00 : f32
      %18 = vector.broadcast %cst_20 : f32 to vector<2x768xf32>
      %c0_21 = arith.constant 0 : index
      %c0_22 = arith.constant 0 : index
      %19 = vector.load %arg11[%c0_21, %c0_22] : memref<2x768xf32, #tpu.memory_space<vmem>>, vector<2x768xf32>
      tpu.vector_store %arg11[%c0_21, %c0_22], %18 {strides = array<i32>} : memref<2x768xf32, #tpu.memory_space<vmem>>, vector<2x768xf32>,
    } else {
    }
    %c0 = arith.constant 0 : index
    %c0_1 = arith.constant 0 : index
    %3 = vector.load %arg10[%c0, %c0_1] : memref<2x768xf32, #tpu.memory_space<vmem>>, vector<2x768xf32>
    %c0_2 = arith.constant 0 : index
    %c0_3 = arith.constant 0 : index
    %c0_4 = arith.constant 0 : index
    %4 = vector.load %arg2[%c0_2, %c0_3, %c0_4] : memref<2x8x768xf32, #tpu.memory_space<vmem>>, vector<2x8x768xf32>
    %cst = arith.constant dense<0.000000e+00> : vector<2x768xf32>
    %5 = vector.multi_reduction <add>, %4, %cst [1] : vector<2x8x768xf32> to vector<2x768xf32>
    %6 = arith.addf %3, %5 : vector<2x768xf32>
    %c0_5 = arith.constant 0 : index
    %c0_6 = arith.constant 0 : index
    %7 = vector.load %arg10[%c0_5, %c0_6] : memref<2x768xf32, #tpu.memory_space<vmem>>, vector<2x768xf32>
    tpu.vector_store %arg10[%c0_5, %c0_6], %6 {strides = array<i32>} : memref<2x768xf32, #tpu.memory_space<vmem>>, vector<2x768xf32>,
    %c0_7 = arith.constant 0 : index
    %c0_8 = arith.constant 0 : index
    %8 = vector.load %arg11[%c0_7, %c0_8] : memref<2x768xf32, #tpu.memory_space<vmem>>, vector<2x768xf32>
    %c0_9 = arith.constant 0 : index
    %c0_10 = arith.constant 0 : index
    %c0_11 = arith.constant 0 : index
    %9 = vector.load %arg3[%c0_9, %c0_10, %c0_11] : memref<2x8x768xf32, #tpu.memory_space<vmem>>, vector<2x8x768xf32>
    %cst_12 = arith.constant dense<0.000000e+00> : vector<2x768xf32>
    %10 = vector.multi_reduction <add>, %9, %cst_12 [1] : vector<2x8x768xf32> to vector<2x768xf32>
    %11 = arith.addf %8, %10 : vector<2x768xf32>
    %c0_13 = arith.constant 0 : index
    %c0_14 = arith.constant 0 : index
    %12 = vector.load %arg11[%c0_13, %c0_14] : memref<2x768xf32, #tpu.memory_space<vmem>>, vector<2x768xf32>
    tpu.vector_store %arg11[%c0_13, %c0_14], %11 {strides = array<i32>} : memref<2x768xf32, #tpu.memory_space<vmem>>, vector<2x768xf32>,
    %c0_i32_15 = arith.constant 0 : i32
    %13 = arith.cmpi eq, %arg1, %c0_i32_15 : i32
    %14 = arith.extui %13 : i1 to i32
    %c0_i32_16 = arith.constant 0 : i32
    %15 = arith.cmpi ne, %14, %c0_i32_16 : i32
    scf.if %15 {
      %c0_17 = arith.constant 0 : index
      %c0_18 = arith.constant 0 : index
      %16 = vector.load %arg10[%c0_17, %c0_18] : memref<2x768xf32, #tpu.memory_space<vmem>>, vector<2x768xf32>
      %c0_19 = arith.constant 0 : index
      %c0_20 = arith.constant 0 : index
      %17 = vector.load %arg11[%c0_19, %c0_20] : memref<2x768xf32, #tpu.memory_space<vmem>>, vector<2x768xf32>
      %18 = arith.maximumf %16, %17 : vector<2x768xf32>
      %cst_21 = arith.constant 1.250000e-01 : f32
      %19 = vector.broadcast %cst_21 : f32 to vector<2x768xf32>
      %20 = arith.mulf %18, %19 : vector<2x768xf32>
      %c0_22 = arith.constant 0 : index
      %c0_23 = arith.constant 0 : index
      %21 = vector.load %arg4[%c0_22, %c0_23] : memref<768x768xf32, #tpu.memory_space<vmem>>, vector<768x768xf32>
      %cst_24 = arith.constant dense<0.000000e+00> : vector<2x768xf32>
      %22 = tpu.matmul %20, %21, %cst_24 {dimension_numbers = #tpu.dot_dimension_numbers<[1], [0], [0], [1], [0, 0, 1, 1], [], []>} : vector<2x768xf32>, vector<768x768xf32>, vector<2x768xf32> -> vector<2x768xf32>
      %c0_25 = arith.constant 0 : index
      %c0_26 = arith.constant 0 : index
      %23 = vector.load %arg5[%c0_25, %c0_26] : memref<1x768xf32, #tpu.memory_space<vmem>>, vector<1x768xf32>
      %24 = vector.broadcast %23 : vector<1x768xf32> to vector<2x768xf32>
      %25 = arith.addf %22, %24 : vector<2x768xf32>
      %26 = arith.addf %25, %20 : vector<2x768xf32>
      %c0_27 = arith.constant 0 : index
      %c0_28 = arith.constant 0 : index
      %27 = vector.load %arg6[%c0_27, %c0_28] : memref<1x768xf32, #tpu.memory_space<vmem>>, vector<1x768xf32>
      %28 = vector.broadcast %27 : vector<1x768xf32> to vector<2x768xf32>
      %29 = arith.mulf %26, %28 : vector<2x768xf32>
      %cst_29 = arith.constant dense<0.000000e+00> : vector<2xf32>
      %30 = vector.multi_reduction <add>, %29, %cst_29 [1] : vector<2x768xf32> to vector<2xf32>
      %31 = vector.shape_cast %30 : vector<2xf32> to vector<2x1xf32>
      %c0_30 = arith.constant 0 : index
      %c0_31 = arith.constant 0 : index
      %32 = memref.load %arg7[%c0_30, %c0_31] : memref<1x1xf32, #tpu.memory_space<smem>>
      %33 = vector.broadcast %32 : f32 to vector<2x1xf32>
      %34 = arith.addf %31, %33 : vector<2x1xf32>
      %c0_32 = arith.constant 0 : index
      %c0_33 = arith.constant 0 : index
      %35 = vector.load %arg9[%c0_32, %c0_33] : memref<2x768xf32, #tpu.memory_space<vmem>>, vector<2x768xf32>
      tpu.vector_store %arg9[%c0_32, %c0_33], %26 {strides = array<i32>} : memref<2x768xf32, #tpu.memory_space<vmem>>, vector<2x768xf32>,
      %c0_34 = arith.constant 0 : index
      %c0_35 = arith.constant 0 : index
      %36 = vector.load %arg8[%c0_34, %c0_35] : memref<2x1xf32, #tpu.memory_space<vmem>>, vector<2x1xf32>
      tpu.vector_store %arg8[%c0_34, %c0_35], %34 {strides = array<i32>} : memref<2x1xf32, #tpu.memory_space<vmem>>, vector<2x1xf32>,
    } else {
    }
    return
  }
  func.func @transform_0(%arg0: i32, %arg1: i32) -> (i32, i32, i32) {
    %c0_i32 = arith.constant 0 : i32
    %c0_i32_0 = arith.constant 0 : i32
    return %arg0, %arg1, %c0_i32 : i32, i32, i32
  }
  func.func @transform_1(%arg0: i32, %arg1: i32) -> (i32, i32, i32) {
    %c0_i32 = arith.constant 0 : i32
    %c0_i32_0 = arith.constant 0 : i32
    return %arg0, %arg1, %c0_i32 : i32, i32, i32
  }
  func.func @transform_2(%arg0: i32, %arg1: i32) -> (i32, i32) {
    %c0_i32 = arith.constant 0 : i32
    %c0_i32_0 = arith.constant 0 : i32
    %c0_i32_1 = arith.constant 0 : i32
    return %c0_i32, %c0_i32_0 : i32, i32
  }
  func.func @transform_3(%arg0: i32, %arg1: i32) -> (i32, i32) {
    %c0_i32 = arith.constant 0 : i32
    %c0_i32_0 = arith.constant 0 : i32
    %c0_i32_1 = arith.constant 0 : i32
    return %c0_i32, %c0_i32_0 : i32, i32
  }
  func.func @transform_4(%arg0: i32, %arg1: i32) -> (i32, i32) {
    %c0_i32 = arith.constant 0 : i32
    %c0_i32_0 = arith.constant 0 : i32
    %c0_i32_1 = arith.constant 0 : i32
    return %c0_i32, %c0_i32_0 : i32, i32
  }
  func.func @transform_5(%arg0: i32, %arg1: i32) -> (i32, i32) {
    %c0_i32 = arith.constant 0 : i32
    %c0_i32_0 = arith.constant 0 : i32
    %c0_i32_1 = arith.constant 0 : i32
    return %c0_i32, %c0_i32_0 : i32, i32
  }
  func.func @transform_6(%arg0: i32, %arg1: i32) -> (i32, i32) {
    %c0_i32 = arith.constant 0 : i32
    %c0_i32_0 = arith.constant 0 : i32
    return %arg0, %c0_i32 : i32, i32
  }
  func.func @transform_7(%arg0: i32, %arg1: i32) -> (i32, i32) {
    %c0_i32 = arith.constant 0 : i32
    %c0_i32_0 = arith.constant 0 : i32
    return %arg0, %c0_i32 : i32, i32
  }
}

</mosaic_0001>

<llo_original>
// kernel: tpu_custom_call.1
$region0: #{tpu_custom_call.1}
  #allocation0 [shape = 'u32[]', space=smem, size = 0x4, offset = 0x4, fixed_abs, tag = 'smem constant byte address 0x4 - core index']
  #allocation1 [shape = 'u32[72,128]{1,0:T(1,128)}', space=vmem, size = 0x9000, scoped, tag = 'internal scratch']
  #allocation2 [shape = 'f32[2,768]{1,0:T(2,128)}', space=vmem, size = 0x1800, scoped, tag = 'scratch operand']
  #allocation3 [shape = 'f32[2,768]{1,0:T(2,128)}', space=vmem, size = 0x1800, scoped, tag = 'scratch operand']
  #allocation4 [shape = 'f32[1,1]{1,0:T(1,128)S(6)}', space=smem, size = 0x200, scoped, tag = 'scoped memory for tpu_custom_call.1']
  %s0 = inlined_call_operand.hbm [shape: f32[2,8,768], index: 0, kind: input, shape index: {}]
  %s1 = inlined_call_operand.hbm [shape: f32[2,8,768], index: 1, kind: input, shape index: {}]
  %s2 = inlined_call_operand.hbm [shape: f32[768,768], index: 2, kind: input, shape index: {}]
  %s3 = inlined_call_operand.hbm [shape: f32[1,768], index: 3, kind: input, shape index: {}]
  %s4 = inlined_call_operand.hbm [shape: f32[1,768], index: 4, kind: input, shape index: {}]
  %s5 = inlined_call_operand.<no memory space> [shape: f32[1,1], index: 5, kind: input, shape index: {}]
  %s6 = inlined_call_operand.vmem [shape: f32[2,1], index: 6, kind: output, shape index: {0}]
  %s7 = inlined_call_operand.hbm [shape: f32[2,768], index: 7, kind: output, shape index: {1}]
  %8 = xla_tuple %s6, %s7
  %s9 = sld [smem:[#allocation0]]
  $region70: #{tpu_custom_call.1} parent=0
    _
  %s11 = ssub.s32 1, %s9
  %s12 = scalar_select 0, %s11, %s9
  %13 = sst [smem:[#allocation4]] %s5
  $region1: #{tpu_custom_call.1} parent=0
    #allocation5 [shape = 'u8[49152]{0}', space=vmem, size = 0xc000, scoped, tag = 'input window, operand 0, single buffered']
    #allocation6 [shape = 's32[1]{0}', space=sflag, size = 0x4, scoped, tag = 'scoped memory for tpu_custom_call.1']
    #allocation7 [shape = 's32[1]{0}', space=sflag, size = 0x4, scoped, tag = 'scoped memory for tpu_custom_call.1']
    #allocation8 [shape = 'u8[49152]{0}', space=vmem, size = 0xc000, scoped, tag = 'input window, operand 1, single buffered']
    #allocation9 [shape = 's32[1]{0}', space=sflag, size = 0x4, scoped, tag = 'scoped memory for tpu_custom_call.1']
    #allocation10 [shape = 'u8[2359296]{0}', space=vmem, size = 0x240000, scoped, tag = 'input window, operand 2, single buffered']
    #allocation11 [shape = 'u8[3072]{0}', space=vmem, size = 0xc00, scoped, tag = 'input window, operand 3, single buffered']
    #allocation12 [shape = 's32[1]{0}', space=sflag, size = 0x4, scoped, tag = 'scoped memory for tpu_custom_call.1']
    #allocation13 [shape = 'u8[3072]{0}', space=vmem, size = 0xc00, scoped, tag = 'input window, operand 4, single buffered']
    #allocation14 [shape = 'u8[6144]{0}', space=vmem, size = 0x1800, scoped, tag = 'output window, operand 1, single buffered']
    %14 = vsyncpa [#allocation6], 0
    %15 = vsyncpa [#allocation9], 0
    %16 = vsyncpa [#allocation12], 0
    %17 = vsyncpa [#allocation7], 0
    // Predicated region
    $region2: #{tpu_custom_call.1} parent=1 // pred_check
      _
    $region3: #{tpu_custom_call.1} parent=1 // pred_check_branch
      %19 = sbr.rel (0) target = $region5
    $region4: #{tpu_custom_call.1} parent=1 // pred_region
      %21 = vsyncadd [#allocation6], 0
      %s22 = sshll.u32 %s0, 4
      %s23 = int_to_ptr.hbm [resolvable:$true] %s22
      %s24 = sshll.u32 [#allocation5], 4
      %s25 = int_to_ptr.vmem [resolvable:$true] %s24
      %30 = dma.hbm_to_vmem [thread:$0]  %s23, 1536, %s25, [#allocation6], 768, 768, 48
    $region5: #{tpu_custom_call.1} parent=1 // pred_fallthru
      _
    // Predicated region
    $region6: #{tpu_custom_call.1} parent=1 // pred_check
      _
    $region7: #{tpu_custom_call.1} parent=1 // pred_check_branch
      %32 = sbr.rel (0) target = $region9
    $region8: #{tpu_custom_call.1} parent=1 // pred_region
      %34 = vsyncadd [#allocation9], 0
      %s35 = sshll.u32 %s1, 4
      %s36 = int_to_ptr.hbm [resolvable:$true] %s35
      %s37 = sshll.u32 [#allocation8], 4
      %s38 = int_to_ptr.vmem [resolvable:$true] %s37
      %43 = dma.hbm_to_vmem [thread:$0]  %s36, 1536, %s38, [#allocation9], 768, 768, 48
    $region9: #{tpu_custom_call.1} parent=1 // pred_fallthru
      _
    // Predicated region
    $region10: #{tpu_custom_call.1} parent=1 // pred_check
      _
    $region11: #{tpu_custom_call.1} parent=1 // pred_check_branch
      %45 = sbr.rel (0) target = $region13
    $region12: #{tpu_custom_call.1} parent=1 // pred_region
      %47 = vsyncadd [#allocation9], 0
      %s48 = sshll.u32 %s2, 4
      %s49 = int_to_ptr.hbm [resolvable:$true] %s48
      %s50 = sshll.u32 [#allocation10], 4
      %s51 = int_to_ptr.vmem [resolvable:$true] %s50
      %56 = dma.hbm_to_vmem [thread:$0]  %s49, 73728, %s51, [#allocation9], 768, 768, 48
    $region13: #{tpu_custom_call.1} parent=1 // pred_fallthru
      _
    // Predicated region
    $region14: #{tpu_custom_call.1} parent=1 // pred_check
      _
    $region15: #{tpu_custom_call.1} parent=1 // pred_check_branch
      %58 = sbr.rel (0) target = $region17
    $region16: #{tpu_custom_call.1} parent=1 // pred_region
      %60 = vsyncadd [#allocation12], 0
      %s62 = sshll.u32 %s3, 4
      %s63 = int_to_ptr.hbm [resolvable:$true] %s62
      %s64 = sshll.u32 [#allocation11], 4
      %s65 = int_to_ptr.vmem [resolvable:$true] %s64
      %67 = dma.hbm_to_vmem [thread:$0]  %s63, 96, %s65, [#allocation12]
    $region17: #{tpu_custom_call.1} parent=1 // pred_fallthru
      _
    // Predicated region
    $region18: #{tpu_custom_call.1} parent=1 // pred_check
      _
    $region19: #{tpu_custom_call.1} parent=1 // pred_check_branch
      %69 = sbr.rel (0) target = $region21
    $region20: #{tpu_custom_call.1} parent=1 // pred_region
      %71 = vsyncadd [#allocation12], 0
      %s73 = sshll.u32 %s4, 4
      %s74 = int_to_ptr.hbm [resolvable:$true] %s73
      %s75 = sshll.u32 [#allocation13], 4
      %s76 = int_to_ptr.vmem [resolvable:$true] %s75
      %78 = dma.hbm_to_vmem [thread:$0]  %s74, 96, %s76, [#allocation12]
    $region21: #{tpu_custom_call.1} parent=1 // pred_fallthru
      _
    // Predicated region
    $region22: #{tpu_custom_call.1} parent=1 // pred_check
      _
    $region23: #{tpu_custom_call.1} parent=1 // pred_check_branch
      %80 = sbr.rel (0) target = $region25
    $region24: #{tpu_custom_call.1} parent=1 // pred_region
      _
    $region25: #{tpu_custom_call.1} parent=1 // pred_fallthru
      _
    // Predicated region
    $region26: #{tpu_custom_call.1} parent=1 // pred_check
      _
    $region27: #{tpu_custom_call.1} parent=1 // pred_check_branch
      %82 = sbr.rel (0) target = $region29
    $region28: #{tpu_custom_call.1} parent=1 // pred_region
      %84 = dma.done [#allocation6], 1536
    $region29: #{tpu_custom_call.1} parent=1 // pred_fallthru
      _
    // Predicated region
    $region30: #{tpu_custom_call.1} parent=1 // pred_check
      _
    $region31: #{tpu_custom_call.1} parent=1 // pred_check_branch
      %86 = sbr.rel (0) target = $region33
    $region32: #{tpu_custom_call.1} parent=1 // pred_region
      %88 = dma.done [#allocation9], 1536
    $region33: #{tpu_custom_call.1} parent=1 // pred_fallthru
      _
    // Predicated region
    $region34: #{tpu_custom_call.1} parent=1 // pred_check
      _
    $region35: #{tpu_custom_call.1} parent=1 // pred_check_branch
      %90 = sbr.rel (0) target = $region37
    $region36: #{tpu_custom_call.1} parent=1 // pred_region
      %92 = dma.done [#allocation9], 73728
    $region37: #{tpu_custom_call.1} parent=1 // pred_fallthru
      _
    // Predicated region
    $region38: #{tpu_custom_call.1} parent=1 // pred_check
      _
    $region39: #{tpu_custom_call.1} parent=1 // pred_check_branch
      %94 = sbr.rel (0) target = $region41
    $region40: #{tpu_custom_call.1} parent=1 // pred_region
      %96 = dma.done [#allocation12], 96
    $region41: #{tpu_custom_call.1} parent=1 // pred_fallthru
      _
    // Predicated region
    $region42: #{tpu_custom_call.1} parent=1 // pred_check
      _
    $region43: #{tpu_custom_call.1} parent=1 // pred_check_branch
      %98 = sbr.rel (0) target = $region45
    $region44: #{tpu_custom_call.1} parent=1 // pred_region
      %100 = dma.done [#allocation12], 96
    $region45: #{tpu_custom_call.1} parent=1 // pred_fallthru
      _
    %p101 = scmp.eq.s32.totalorder 0, 0
    // Predicated region
    $region46: #{tpu_custom_call.1} parent=1 // pred_check
      %p102 = pneg %p101
    $region47: #{tpu_custom_call.1} parent=1 // pred_check_branch
      %104 = sbr.rel (%p102) target = $region49
    $region48: #{tpu_custom_call.1} parent=1 // pred_region
      %105 = vst [vmem:[#allocation2] sm:$0xff] 0.0
      %106 = vst [vmem:[#allocation2 + $0x8] sm:$0xf] 0.0
      %107 = vst [vmem:[#allocation3] sm:$0xff] 0.0
      %108 = vst [vmem:[#allocation3 + $0x8] sm:$0xf] 0.0
    $region49: #{tpu_custom_call.1} parent=1 // pred_fallthru
      _
    %v109 = vld [vmem:[#allocation2] sm:$0xff]
    %v110 = vld [vmem:[#allocation2 + $0x8] sm:$0xf]
    %v111 = vld [vmem:[#allocation5] sm:$0xff]
    %v112 = vld [vmem:[#allocation5 + $0x8] sm:$0xff]
    %v113 = vld [vmem:[#allocation5 + $0x10] sm:$0xff]
    %v114 = vld [vmem:[#allocation5 + $0x18] sm:$0xff]
    %v115 = vld [vmem:[#allocation5 + $0x20] sm:$0xff]
    %v116 = vld [vmem:[#allocation5 + $0x28] sm:$0xff]
    %v117 = vld [vmem:[#allocation5 + $0x30] sm:$0xff]
    %v118 = vld [vmem:[#allocation5 + $0x38] sm:$0xff]
    %v119 = vld [vmem:[#allocation5 + $0x40] sm:$0xff]
    %v120 = vld [vmem:[#allocation5 + $0x48] sm:$0xff]
    %v121 = vld [vmem:[#allocation5 + $0x50] sm:$0xff]
    %v122 = vld [vmem:[#allocation5 + $0x58] sm:$0xff]
    %v123 = vrot.slane %v111, 4
    %v124 = vadd.f32 %v111, %v123
    %v125 = vrot.slane %v124, 2
    %v126 = vadd.f32 %v124, %v125
    %v127 = vrot.slane %v126, 1
    %v128 = vadd.f32 %v126, %v127
    %v129 = vrot.slane %v112, 4
    %v130 = vadd.f32 %v112, %v129
    %v131 = vrot.slane %v130, 2
    %v132 = vadd.f32 %v130, %v131
    %v133 = vrot.slane %v132, 1
    %v134 = vadd.f32 %v132, %v133
    %v135 = vrot.slane %v113, 4
    %v136 = vadd.f32 %v113, %v135
    %v137 = vrot.slane %v136, 2
    %v138 = vadd.f32 %v136, %v137
    %v139 = vrot.slane %v138, 1
    %v140 = vadd.f32 %v138, %v139
    %v141 = vrot.slane %v114, 4
    %v142 = vadd.f32 %v114, %v141
    %v143 = vrot.slane %v142, 2
    %v144 = vadd.f32 %v142, %v143
    %v145 = vrot.slane %v144, 1
    %v146 = vadd.f32 %v144, %v145
    %v147 = vrot.slane %v115, 4
    %v148 = vadd.f32 %v115, %v147
    %v149 = vrot.slane %v148, 2
    %v150 = vadd.f32 %v148, %v149
    %v151 = vrot.slane %v150, 1
    %v152 = vadd.f32 %v150, %v151
    %v153 = vrot.slane %v116, 4
    %v154 = vadd.f32 %v116, %v153
    %v155 = vrot.slane %v154, 2
    %v156 = vadd.f32 %v154, %v155
    %v157 = vrot.slane %v156, 1
    %v158 = vadd.f32 %v156, %v157
    %v159 = vrot.slane %v117, 4
    %v160 = vadd.f32 %v117, %v159
    %v161 = vrot.slane %v160, 2
    %v162 = vadd.f32 %v160, %v161
    %v163 = vrot.slane %v162, 1
    %v164 = vadd.f32 %v162, %v163
    %v165 = vrot.slane %v118, 4
    %v166 = vadd.f32 %v118, %v165
    %v167 = vrot.slane %v166, 2
    %v168 = vadd.f32 %v166, %v167
    %v169 = vrot.slane %v168, 1
    %v170 = vadd.f32 %v168, %v169
    %v171 = vrot.slane %v119, 4
    %v172 = vadd.f32 %v119, %v171
    %v173 = vrot.slane %v172, 2
    %v174 = vadd.f32 %v172, %v173
    %v175 = vrot.slane %v174, 1
    %v176 = vadd.f32 %v174, %v175
    %v177 = vrot.slane %v120, 4
    %v178 = vadd.f32 %v120, %v177
    %v179 = vrot.slane %v178, 2
    %v180 = vadd.f32 %v178, %v179
    %v181 = vrot.slane %v180, 1
    %v182 = vadd.f32 %v180, %v181
    %v183 = vrot.slane %v121, 4
    %v184 = vadd.f32 %v121, %v183
    %v185 = vrot.slane %v184, 2
    %v186 = vadd.f32 %v184, %v185
    %v187 = vrot.slane %v186, 1
    %v188 = vadd.f32 %v186, %v187
    %v189 = vrot.slane %v122, 4
    %v190 = vadd.f32 %v122, %v189
    %v191 = vrot.slane %v190, 2
    %v192 = vadd.f32 %v190, %v191
    %v193 = vrot.slane %v192, 1
    %v194 = vadd.f32 %v192, %v193
    %v207 = vrot.slane %v134, 6
    %v208 = vrot.slane %v140, 4
    %v209 = vrot.slane %v146, 2
    %v210 = vrot.slane %v158, 6
    %v211 = vrot.slane %v170, 6
    %v212 = vrot.slane %v176, 4
    %v213 = vrot.slane %v182, 2
    %v214 = vrot.slane %v194, 6
    %vm215 = vcmask 1041408
    %v216 = vsel %vm215, %v128, %v207
    %vm217 = vcmask 1045508
    %v218 = vsel %vm217, %v208, %v209
    %vm219 = vcmask 1043456
    %v220 = vsel %vm219, %v216, %v218
    %v221 = vsel %vm215, %v152, %v210
    %v222 = vsel %vm215, %v164, %v211
    %v223 = vsel %vm217, %v212, %v213
    %v224 = vsel %vm219, %v222, %v223
    %v225 = vsel %vm215, %v188, %v214
    %vm226 = vcmask 1044484
    %v227 = vsel %vm226, %v220, %v220
    %vm228 = vcmask 1046534
    %v229 = vsel %vm228, %v220, %v227
    %v230 = vrot.slane %v224, 7
    %vm231 = vcmask 1041409
    %v232 = vsel %vm231, %v230, %v229
    %vm233 = vcmask 1043459
    %v234 = vsel %vm233, %v230, %v232
    %vm235 = vcmask 1045509
    %v236 = vsel %vm235, %v230, %v234
    %vm237 = vcmask 1047559
    %v238 = vsel %vm237, %v230, %v236
    %v239 = vsel %vm226, %v221, %v221
    %v240 = vsel %vm228, %v221, %v239
    %v241 = vrot.slane %v225, 7
    %v242 = vsel %vm231, %v241, %v240
    %v243 = vsel %vm233, %v241, %v242
    %v244 = vsel %vm235, %v241, %v243
    %v245 = vsel %vm237, %v241, %v244
    %v248 = vadd.f32 %v109, %v238
    %v249 = vadd.f32 %v110, %v245
    %250 = vst [vmem:[#allocation2] sm:$0xff] %v248
    %251 = vst [vmem:[#allocation2 + $0x8] sm:$0xf] %v249
    %v252 = vld [vmem:[#allocation3] sm:$0xff]
    %v253 = vld [vmem:[#allocation3 + $0x8] sm:$0xf]
    %v254 = vld [vmem:[#allocation8] sm:$0xff]
    %v255 = vld [vmem:[#allocation8 + $0x8] sm:$0xff]
    %v256 = vld [vmem:[#allocation8 + $0x10] sm:$0xff]
    %v257 = vld [vmem:[#allocation8 + $0x18] sm:$0xff]
    %v258 = vld [vmem:[#allocation8 + $0x20] sm:$0xff]
    %v259 = vld [vmem:[#allocation8 + $0x28] sm:$0xff]
    %v260 = vld [vmem:[#allocation8 + $0x30] sm:$0xff]
    %v261 = vld [vmem:[#allocation8 + $0x38] sm:$0xff]
    %v262 = vld [vmem:[#allocation8 + $0x40] sm:$0xff]
    %v263 = vld [vmem:[#allocation8 + $0x48] sm:$0xff]
    %v264 = vld [vmem:[#allocation8 + $0x50] sm:$0xff]
    %v265 = vld [vmem:[#allocation8 + $0x58] sm:$0xff]
    %v266 = vrot.slane %v254, 4
    %v267 = vadd.f32 %v254, %v266
    %v268 = vrot.slane %v267, 2
    %v269 = vadd.f32 %v267, %v268
    %v270 = vrot.slane %v269, 1
    %v271 = vadd.f32 %v269, %v270
    %v272 = vrot.slane %v255, 4
    %v273 = vadd.f32 %v255, %v272
    %v274 = vrot.slane %v273, 2
    %v275 = vadd.f32 %v273, %v274
    %v276 = vrot.slane %v275, 1
    %v277 = vadd.f32 %v275, %v276
    %v278 = vrot.slane %v256, 4
    %v279 = vadd.f32 %v256, %v278
    %v280 = vrot.slane %v279, 2
    %v281 = vadd.f32 %v279, %v280
    %v282 = vrot.slane %v281, 1
    %v283 = vadd.f32 %v281, %v282
    %v284 = vrot.slane %v257, 4
    %v285 = vadd.f32 %v257, %v284
    %v286 = vrot.slane %v285, 2
    %v287 = vadd.f32 %v285, %v286
    %v288 = vrot.slane %v287, 1
    %v289 = vadd.f32 %v287, %v288
    %v290 = vrot.slane %v258, 4
    %v291 = vadd.f32 %v258, %v290
    %v292 = vrot.slane %v291, 2
    %v293 = vadd.f32 %v291, %v292
    %v294 = vrot.slane %v293, 1
    %v295 = vadd.f32 %v293, %v294
    %v296 = vrot.slane %v259, 4
    %v297 = vadd.f32 %v259, %v296
    %v298 = vrot.slane %v297, 2
    %v299 = vadd.f32 %v297, %v298
    %v300 = vrot.slane %v299, 1
    %v301 = vadd.f32 %v299, %v300
    %v302 = vrot.slane %v260, 4
    %v303 = vadd.f32 %v260, %v302
    %v304 = vrot.slane %v303, 2
    %v305 = vadd.f32 %v303, %v304
    %v306 = vrot.slane %v305, 1
    %v307 = vadd.f32 %v305, %v306
    %v308 = vrot.slane %v261, 4
    %v309 = vadd.f32 %v261, %v308
    %v310 = vrot.slane %v309, 2
    %v311 = vadd.f32 %v309, %v310
    %v312 = vrot.slane %v311, 1
    %v313 = vadd.f32 %v311, %v312
    %v314 = vrot.slane %v262, 4
    %v315 = vadd.f32 %v262, %v314
    %v316 = vrot.slane %v315, 2
    %v317 = vadd.f32 %v315, %v316
    %v318 = vrot.slane %v317, 1
    %v319 = vadd.f32 %v317, %v318
    %v320 = vrot.slane %v263, 4
    %v321 = vadd.f32 %v263, %v320
    %v322 = vrot.slane %v321, 2
    %v323 = vadd.f32 %v321, %v322
    %v324 = vrot.slane %v323, 1
    %v325 = vadd.f32 %v323, %v324
    %v326 = vrot.slane %v264, 4
    %v327 = vadd.f32 %v264, %v326
    %v328 = vrot.slane %v327, 2
    %v329 = vadd.f32 %v327, %v328
    %v330 = vrot.slane %v329, 1
    %v331 = vadd.f32 %v329, %v330
    %v332 = vrot.slane %v265, 4
    %v333 = vadd.f32 %v265, %v332
    %v334 = vrot.slane %v333, 2
    %v335 = vadd.f32 %v333, %v334
    %v336 = vrot.slane %v335, 1
    %v337 = vadd.f32 %v335, %v336
    %v350 = vrot.slane %v277, 6
    %v351 = vrot.slane %v283, 4
    %v352 = vrot.slane %v289, 2
    %v353 = vrot.slane %v301, 6
    %v354 = vrot.slane %v313, 6
    %v355 = vrot.slane %v319, 4
    %v356 = vrot.slane %v325, 2
    %v357 = vrot.slane %v337, 6
    %v358 = vsel %vm215, %v271, %v350
    %v359 = vsel %vm217, %v351, %v352
    %v360 = vsel %vm219, %v358, %v359
    %v361 = vsel %vm215, %v295, %v353
    %v362 = vsel %vm215, %v307, %v354
    %v363 = vsel %vm217, %v355, %v356
    %v364 = vsel %vm219, %v362, %v363
    %v365 = vsel %vm215, %v331, %v357
    %v366 = vsel %vm226, %v360, %v360
    %v367 = vsel %vm228, %v360, %v366
    %v368 = vrot.slane %v364, 7
    %v369 = vsel %vm231, %v368, %v367
    %v370 = vsel %vm233, %v368, %v369
    %v371 = vsel %vm235, %v368, %v370
    %v372 = vsel %vm237, %v368, %v371
    %v373 = vsel %vm226, %v361, %v361
    %v374 = vsel %vm228, %v361, %v373
    %v375 = vrot.slane %v365, 7
    %v376 = vsel %vm231, %v375, %v374
    %v377 = vsel %vm233, %v375, %v376
    %v378 = vsel %vm235, %v375, %v377
    %v379 = vsel %vm237, %v375, %v378
    %v382 = vadd.f32 %v252, %v372
    %v383 = vadd.f32 %v253, %v379
    %384 = vst [vmem:[#allocation3] sm:$0xff] %v382
    %385 = vst [vmem:[#allocation3 + $0x8] sm:$0xf] %v383
    // Predicated region
    $region50: #{tpu_custom_call.1} parent=1 // pred_check
      %p386 = pneg %p101
    $region51: #{tpu_custom_call.1} parent=1 // pred_check_branch
      %388 = sbr.rel (%p386) target = $region53
    $region52: #{tpu_custom_call.1} parent=1 // pred_region
      %v389 = vld [vmem:[#allocation2] sm:$0xff]
      %v390 = vld [vmem:[#allocation2 + $0x8] sm:$0xf]
      %v391 = vld [vmem:[#allocation3] sm:$0xff]
      %v392 = vld [vmem:[#allocation3 + $0x8] sm:$0xf]
      %v393 = vmax.f32 %v389, %v391
      %v394 = vmax.f32 %v390, %v392
      %v395 = vmul.f32 %v393, 0.125
      %v396 = vmul.f32 %v394, 0.125
      %v397 = vld [vmem:[#allocation10] sm:$0xff]
      %v398 = vld [vmem:[#allocation10 + $0x8] sm:$0xff]
      %v399 = vld [vmem:[#allocation10 + $0x10] sm:$0xff]
      %v400 = vld [vmem:[#allocation10 + $0x18] sm:$0xff]
      %v401 = vld [vmem:[#allocation10 + $0x20] sm:$0xff]
      %v402 = vld [vmem:[#allocation10 + $0x28] sm:$0xff]
      %v403 = vld [vmem:[#allocation10 + $0x30] sm:$0xff]
      %v404 = vld [vmem:[#allocation10 + $0x38] sm:$0xff]
      %v405 = vld [vmem:[#allocation10 + $0x40] sm:$0xff]
      %v406 = vld [vmem:[#allocation10 + $0x48] sm:$0xff]
      %v407 = vld [vmem:[#allocation10 + $0x50] sm:$0xff]
      %v408 = vld [vmem:[#allocation10 + $0x58] sm:$0xff]
      %v409 = vld [vmem:[#allocation10 + $0x60] sm:$0xff]
      %v410 = vld [vmem:[#allocation10 + $0x68] sm:$0xff]
      %v411 = vld [vmem:[#allocation10 + $0x70] sm:$0xff]
      %v412 = vld [vmem:[#allocation10 + $0x78] sm:$0xff]
      %v413 = vld [vmem:[#allocation10 + $0x80] sm:$0xff]
      %v414 = vld [vmem:[#allocation10 + $0x88] sm:$0xff]
      %v415 = vld [vmem:[#allocation10 + $0x90] sm:$0xff]
      %v416 = vld [vmem:[#allocation10 + $0x98] sm:$0xff]
      %v417 = vld [vmem:[#allocation10 + $0xa0] sm:$0xff]
      %v418 = vld [vmem:[#allocation10 + $0xa8] sm:$0xff]
      %v419 = vld [vmem:[#allocation10 + $0xb0] sm:$0xff]
      %v420 = vld [vmem:[#allocation10 + $0xb8] sm:$0xff]
      %v421 = vld [vmem:[#allocation10 + $0xc0] sm:$0xff]
      %v422 = vld [vmem:[#allocation10 + $0xc8] sm:$0xff]
      %v423 = vld [vmem:[#allocation10 + $0xd0] sm:$0xff]
      %v424 = vld [vmem:[#allocation10 + $0xd8] sm:$0xff]
      %v425 = vld [vmem:[#allocation10 + $0xe0] sm:$0xff]
      %v426 = vld [vmem:[#allocation10 + $0xe8] sm:$0xff]
      %v427 = vld [vmem:[#allocation10 + $0xf0] sm:$0xff]
      %v428 = vld [vmem:[#allocation10 + $0xf8] sm:$0xff]
      %v429 = vld [vmem:[#allocation10 + $0x100] sm:$0xff]
      %v430 = vld [vmem:[#allocation10 + $0x108] sm:$0xff]
      %v431 = vld [vmem:[#allocation10 + $0x110] sm:$0xff]
      %v432 = vld [vmem:[#allocation10 + $0x118] sm:$0xff]
      %v433 = vld [vmem:[#allocation10 + $0x120] sm:$0xff]
      %v434 = vld [vmem:[#allocation10 + $0x128] sm:$0xff]
      %v435 = vld [vmem:[#allocation10 + $0x130] sm:$0xff]
      %v436 = vld [vmem:[#allocation10 + $0x138] sm:$0xff]
      %v437 = vld [vmem:[#allocation10 + $0x140] sm:$0xff]
      %v438 = vld [vmem:[#allocation10 + $0x148] sm:$0xff]
      %v439 = vld [vmem:[#allocation10 + $0x150] sm:$0xff]
      %v440 = vld [vmem:[#allocation10 + $0x158] sm:$0xff]
      %v441 = vld [vmem:[#allocation10 + $0x160] sm:$0xff]
      %v442 = vld [vmem:[#allocation10 + $0x168] sm:$0xff]
      %v443 = vld [vmem:[#allocation10 + $0x170] sm:$0xff]
      %v444 = vld [vmem:[#allocation10 + $0x178] sm:$0xff]
      %v445 = vld [vmem:[#allocation10 + $0x180] sm:$0xff]
      %v446 = vld [vmem:[#allocation10 + $0x188] sm:$0xff]
      %v447 = vld [vmem:[#allocation10 + $0x190] sm:$0xff]
      %v448 = vld [vmem:[#allocation10 + $0x198] sm:$0xff]
      %v449 = vld [vmem:[#allocation10 + $0x1a0] sm:$0xff]
      %v450 = vld [vmem:[#allocation10 + $0x1a8] sm:$0xff]
      %v451 = vld [vmem:[#allocation10 + $0x1b0] sm:$0xff]
      %v452 = vld [vmem:[#allocation10 + $0x1b8] sm:$0xff]
      %v453 = vld [vmem:[#allocation10 + $0x1c0] sm:$0xff]
      %v454 = vld [vmem:[#allocation10 + $0x1c8] sm:$0xff]
      %v455 = vld [vmem:[#allocation10 + $0x1d0] sm:$0xff]
      %v456 = vld [vmem:[#allocation10 + $0x1d8] sm:$0xff]
      %v457 = vld [vmem:[#allocation10 + $0x1e0] sm:$0xff]
      %v458 = vld [vmem:[#allocation10 + $0x1e8] sm:$0xff]
      %v459 = vld [vmem:[#allocation10 + $0x1f0] sm:$0xff]
      %v460 = vld [vmem:[#allocation10 + $0x1f8] sm:$0xff]
      %v461 = vld [vmem:[#allocation10 + $0x200] sm:$0xff]
      %v462 = vld [vmem:[#allocation10 + $0x208] sm:$0xff]
      %v463 = vld [vmem:[#allocation10 + $0x210] sm:$0xff]
      %v464 = vld [vmem:[#allocation10 + $0x218] sm:$0xff]
      %v465 = vld [vmem:[#allocation10 + $0x220] sm:$0xff]
      %v466 = vld [vmem:[#allocation10 + $0x228] sm:$0xff]
      %v467 = vld [vmem:[#allocation10 + $0x230] sm:$0xff]
      %v468 = vld [vmem:[#allocation10 + $0x238] sm:$0xff]
      %v469 = vld [vmem:[#allocation10 + $0x240] sm:$0xff]
      %v470 = vld [vmem:[#allocation10 + $0x248] sm:$0xff]
      %v471 = vld [vmem:[#allocation10 + $0x250] sm:$0xff]
      %v472 = vld [vmem:[#allocation10 + $0x258] sm:$0xff]
      %v473 = vld [vmem:[#allocation10 + $0x260] sm:$0xff]
      %v474 = vld [vmem:[#allocation10 + $0x268] sm:$0xff]
      %v475 = vld [vmem:[#allocation10 + $0x270] sm:$0xff]
      %v476 = vld [vmem:[#allocation10 + $0x278] sm:$0xff]
      %v477 = vld [vmem:[#allocation10 + $0x280] sm:$0xff]
      %v478 = vld [vmem:[#allocation10 + $0x288] sm:$0xff]
      %v479 = vld [vmem:[#allocation10 + $0x290] sm:$0xff]
      %v480 = vld [vmem:[#allocation10 + $0x298] sm:$0xff]
      %v481 = vld [vmem:[#allocation10 + $0x2a0] sm:$0xff]
      %v482 = vld [vmem:[#allocation10 + $0x2a8] sm:$0xff]
      %v483 = vld [vmem:[#allocation10 + $0x2b0] sm:$0xff]
      %v484 = vld [vmem:[#allocation10 + $0x2b8] sm:$0xff]
      %v485 = vld [vmem:[#allocation10 + $0x2c0] sm:$0xff]
      %v486 = vld [vmem:[#allocation10 + $0x2c8] sm:$0xff]
      %v487 = vld [vmem:[#allocation10 + $0x2d0] sm:$0xff]
      %v488 = vld [vmem:[#allocation10 + $0x2d8] sm:$0xff]
      %v489 = vld [vmem:[#allocation10 + $0x2e0] sm:$0xff]
      %v490 = vld [vmem:[#allocation10 + $0x2e8] sm:$0xff]
      %v491 = vld [vmem:[#allocation10 + $0x2f0] sm:$0xff]
      %v492 = vld [vmem:[#allocation10 + $0x2f8] sm:$0xff]
      %v493 = vld [vmem:[#allocation10 + $0x300] sm:$0xff]
      %v494 = vld [vmem:[#allocation10 + $0x308] sm:$0xff]
      %v495 = vld [vmem:[#allocation10 + $0x310] sm:$0xff]
      %v496 = vld [vmem:[#allocation10 + $0x318] sm:$0xff]
      %v497 = vld [vmem:[#allocation10 + $0x320] sm:$0xff]
      %v498 = vld [vmem:[#allocation10 + $0x328] sm:$0xff]
      %v499 = vld [vmem:[#allocation10 + $0x330] sm:$0xff]
      %v500 = vld [vmem:[#allocation10 + $0x338] sm:$0xff]
      %v501 = vld [vmem:[#allocation10 + $0x340] sm:$0xff]
      %v502 = vld [vmem:[#allocation10 + $0x348] sm:$0xff]
      %v503 = vld [vmem:[#allocation10 + $0x350] sm:$0xff]
      %v504 = vld [vmem:[#allocation10 + $0x358] sm:$0xff]
      %v505 = vld [vmem:[#allocation10 + $0x360] sm:$0xff]
      %v506 = vld [vmem:[#allocation10 + $0x368] sm:$0xff]
      %v507 = vld [vmem:[#allocation10 + $0x370] sm:$0xff]
      %v508 = vld [vmem:[#allocation10 + $0x378] sm:$0xff]
      %v509 = vld [vmem:[#allocation10 + $0x380] sm:$0xff]
      %v510 = vld [vmem:[#allocation10 + $0x388] sm:$0xff]
      %v511 = vld [vmem:[#allocation10 + $0x390] sm:$0xff]
      %v512 = vld [vmem:[#allocation10 + $0x398] sm:$0xff]
      %v513 = vld [vmem:[#allocation10 + $0x3a0] sm:$0xff]
      %v514 = vld [vmem:[#allocation10 + $0x3a8] sm:$0xff]
      %v515 = vld [vmem:[#allocation10 + $0x3b0] sm:$0xff]
      %v516 = vld [vmem:[#allocation10 + $0x3b8] sm:$0xff]
      %v517 = vld [vmem:[#allocation10 + $0x3c0] sm:$0xff]
      %v518 = vld [vmem:[#allocation10 + $0x3c8] sm:$0xff]
      %v519 = vld [vmem:[#allocation10 + $0x3d0] sm:$0xff]
      %v520 = vld [vmem:[#allocation10 + $0x3d8] sm:$0xff]
      %v521 = vld [vmem:[#allocation10 + $0x3e0] sm:$0xff]
      %v522 = vld [vmem:[#allocation10 + $0x3e8] sm:$0xff]
      %v523 = vld [vmem:[#allocation10 + $0x3f0] sm:$0xff]
      %v524 = vld [vmem:[#allocation10 + $0x3f8] sm:$0xff]
      %v525 = vld [vmem:[#allocation10 + $0x400] sm:$0xff]
      %v526 = vld [vmem:[#allocation10 + $0x408] sm:$0xff]
      %v527 = vld [vmem:[#allocation10 + $0x410] sm:$0xff]
      %v528 = vld [vmem:[#allocation10 + $0x418] sm:$0xff]
      %v529 = vld [vmem:[#allocation10 + $0x420] sm:$0xff]
      %v530 = vld [vmem:[#allocation10 + $0x428] sm:$0xff]
      %v531 = vld [vmem:[#allocation10 + $0x430] sm:$0xff]
      %v532 = vld [vmem:[#allocation10 + $0x438] sm:$0xff]
      %v533 = vld [vmem:[#allocation10 + $0x440] sm:$0xff]
      %v534 = vld [vmem:[#allocation10 + $0x448] sm:$0xff]
      %v535 = vld [vmem:[#allocation10 + $0x450] sm:$0xff]
      %v536 = vld [vmem:[#allocation10 + $0x458] sm:$0xff]
      %v537 = vld [vmem:[#allocation10 + $0x460] sm:$0xff]
      %v538 = vld [vmem:[#allocation10 + $0x468] sm:$0xff]
      %v539 = vld [vmem:[#allocation10 + $0x470] sm:$0xff]
      %v540 = vld [vmem:[#allocation10 + $0x478] sm:$0xff]
      %v541 = vld [vmem:[#allocation10 + $0x480] sm:$0xff]
      %v542 = vld [vmem:[#allocation10 + $0x488] sm:$0xff]
      %v543 = vld [vmem:[#allocation10 + $0x490] sm:$0xff]
      %v544 = vld [vmem:[#allocation10 + $0x498] sm:$0xff]
      %v545 = vld [vmem:[#allocation10 + $0x4a0] sm:$0xff]
      %v546 = vld [vmem:[#allocation10 + $0x4a8] sm:$0xff]
      %v547 = vld [vmem:[#allocation10 + $0x4b0] sm:$0xff]
      %v548 = vld [vmem:[#allocation10 + $0x4b8] sm:$0xff]
      %v549 = vld [vmem:[#allocation10 + $0x4c0] sm:$0xff]
      %v550 = vld [vmem:[#allocation10 + $0x4c8] sm:$0xff]
      %v551 = vld [vmem:[#allocation10 + $0x4d0] sm:$0xff]
      %v552 = vld [vmem:[#allocation10 + $0x4d8] sm:$0xff]
      %v553 = vld [vmem:[#allocation10 + $0x4e0] sm:$0xff]
      %v554 = vld [vmem:[#allocation10 + $0x4e8] sm:$0xff]
      %v555 = vld [vmem:[#allocation10 + $0x4f0] sm:$0xff]
      %v556 = vld [vmem:[#allocation10 + $0x4f8] sm:$0xff]
      %v557 = vld [vmem:[#allocation10 + $0x500] sm:$0xff]
      %v558 = vld [vmem:[#allocation10 + $0x508] sm:$0xff]
      %v559 = vld [vmem:[#allocation10 + $0x510] sm:$0xff]
      %v560 = vld [vmem:[#allocation10 + $0x518] sm:$0xff]
      %v561 = vld [vmem:[#allocation10 + $0x520] sm:$0xff]
      %v562 = vld [vmem:[#allocation10 + $0x528] sm:$0xff]
      %v563 = vld [vmem:[#allocation10 + $0x530] sm:$0xff]
      %v564 = vld [vmem:[#allocation10 + $0x538] sm:$0xff]
      %v565 = vld [vmem:[#allocation10 + $0x540] sm:$0xff]
      %v566 = vld [vmem:[#allocation10 + $0x548] sm:$0xff]
      %v567 = vld [vmem:[#allocation10 + $0x550] sm:$0xff]
      %v568 = vld [vmem:[#allocation10 + $0x558] sm:$0xff]
      %v569 = vld [vmem:[#allocation10 + $0x560] sm:$0xff]
      %v570 = vld [vmem:[#allocation10 + $0x568] sm:$0xff]
      %v571 = vld [vmem:[#allocation10 + $0x570] sm:$0xff]
      %v572 = vld [vmem:[#allocation10 + $0x578] sm:$0xff]
      %v573 = vld [vmem:[#allocation10 + $0x580] sm:$0xff]
      %v574 = vld [vmem:[#allocation10 + $0x588] sm:$0xff]
      %v575 = vld [vmem:[#allocation10 + $0x590] sm:$0xff]
      %v576 = vld [vmem:[#allocation10 + $0x598] sm:$0xff]
      %v577 = vld [vmem:[#allocation10 + $0x5a0] sm:$0xff]
      %v578 = vld [vmem:[#allocation10 + $0x5a8] sm:$0xff]
      %v579 = vld [vmem:[#allocation10 + $0x5b0] sm:$0xff]
      %v580 = vld [vmem:[#allocation10 + $0x5b8] sm:$0xff]
      %v581 = vld [vmem:[#allocation10 + $0x5c0] sm:$0xff]
      %v582 = vld [vmem:[#allocation10 + $0x5c8] sm:$0xff]
      %v583 = vld [vmem:[#allocation10 + $0x5d0] sm:$0xff]
      %v584 = vld [vmem:[#allocation10 + $0x5d8] sm:$0xff]
      %v585 = vld [vmem:[#allocation10 + $0x5e0] sm:$0xff]
      %v586 = vld [vmem:[#allocation10 + $0x5e8] sm:$0xff]
      %v587 = vld [vmem:[#allocation10 + $0x5f0] sm:$0xff]
      %v588 = vld [vmem:[#allocation10 + $0x5f8] sm:$0xff]
      %v589 = vld [vmem:[#allocation10 + $0x600] sm:$0xff]
      %v590 = vld [vmem:[#allocation10 + $0x608] sm:$0xff]
      %v591 = vld [vmem:[#allocation10 + $0x610] sm:$0xff]
      %v592 = vld [vmem:[#allocation10 + $0x618] sm:$0xff]
      %v593 = vld [vmem:[#allocation10 + $0x620] sm:$0xff]
      %v594 = vld [vmem:[#allocation10 + $0x628] sm:$0xff]
      %v595 = vld [vmem:[#allocation10 + $0x630] sm:$0xff]
      %v596 = vld [vmem:[#allocation10 + $0x638] sm:$0xff]
      %v597 = vld [vmem:[#allocation10 + $0x640] sm:$0xff]
      %v598 = vld [vmem:[#allocation10 + $0x648] sm:$0xff]
      %v599 = vld [vmem:[#allocation10 + $0x650] sm:$0xff]
      %v600 = vld [vmem:[#allocation10 + $0x658] sm:$0xff]
      %v601 = vld [vmem:[#allocation10 + $0x660] sm:$0xff]
      %v602 = vld [vmem:[#allocation10 + $0x668] sm:$0xff]
      %v603 = vld [vmem:[#allocation10 + $0x670] sm:$0xff]
      %v604 = vld [vmem:[#allocation10 + $0x678] sm:$0xff]
      %v605 = vld [vmem:[#allocation10 + $0x680] sm:$0xff]
      %v606 = vld [vmem:[#allocation10 + $0x688] sm:$0xff]
      %v607 = vld [vmem:[#allocation10 + $0x690] sm:$0xff]
      %v608 = vld [vmem:[#allocation10 + $0x698] sm:$0xff]
      %v609 = vld [vmem:[#allocation10 + $0x6a0] sm:$0xff]
      %v610 = vld [vmem:[#allocation10 + $0x6a8] sm:$0xff]
      %v611 = vld [vmem:[#allocation10 + $0x6b0] sm:$0xff]
      %v612 = vld [vmem:[#allocation10 + $0x6b8] sm:$0xff]
      %v613 = vld [vmem:[#allocation10 + $0x6c0] sm:$0xff]
      %v614 = vld [vmem:[#allocation10 + $0x6c8] sm:$0xff]
      %v615 = vld [vmem:[#allocation10 + $0x6d0] sm:$0xff]
      %v616 = vld [vmem:[#allocation10 + $0x6d8] sm:$0xff]
      %v617 = vld [vmem:[#allocation10 + $0x6e0] sm:$0xff]
      %v618 = vld [vmem:[#allocation10 + $0x6e8] sm:$0xff]
      %v619 = vld [vmem:[#allocation10 + $0x6f0] sm:$0xff]
      %v620 = vld [vmem:[#allocation10 + $0x6f8] sm:$0xff]
      %v621 = vld [vmem:[#allocation10 + $0x700] sm:$0xff]
      %v622 = vld [vmem:[#allocation10 + $0x708] sm:$0xff]
      %v623 = vld [vmem:[#allocation10 + $0x710] sm:$0xff]
      %v624 = vld [vmem:[#allocation10 + $0x718] sm:$0xff]
      %v625 = vld [vmem:[#allocation10 + $0x720] sm:$0xff]
      %v626 = vld [vmem:[#allocation10 + $0x728] sm:$0xff]
      %v627 = vld [vmem:[#allocation10 + $0x730] sm:$0xff]
      %v628 = vld [vmem:[#allocation10 + $0x738] sm:$0xff]
      %v629 = vld [vmem:[#allocation10 + $0x740] sm:$0xff]
      %v630 = vld [vmem:[#allocation10 + $0x748] sm:$0xff]
      %v631 = vld [vmem:[#allocation10 + $0x750] sm:$0xff]
      %v632 = vld [vmem:[#allocation10 + $0x758] sm:$0xff]
      %v633 = vld [vmem:[#allocation10 + $0x760] sm:$0xff]
      %v634 = vld [vmem:[#allocation10 + $0x768] sm:$0xff]
      %v635 = vld [vmem:[#allocation10 + $0x770] sm:$0xff]
      %v636 = vld [vmem:[#allocation10 + $0x778] sm:$0xff]
      %v637 = vld [vmem:[#allocation10 + $0x780] sm:$0xff]
      %v638 = vld [vmem:[#allocation10 + $0x788] sm:$0xff]
      %v639 = vld [vmem:[#allocation10 + $0x790] sm:$0xff]
      %v640 = vld [vmem:[#allocation10 + $0x798] sm:$0xff]
      %v641 = vld [vmem:[#allocation10 + $0x7a0] sm:$0xff]
      %v642 = vld [vmem:[#allocation10 + $0x7a8] sm:$0xff]
      %v643 = vld [vmem:[#allocation10 + $0x7b0] sm:$0xff]
      %v644 = vld [vmem:[#allocation10 + $0x7b8] sm:$0xff]
      %v645 = vld [vmem:[#allocation10 + $0x7c0] sm:$0xff]
      %v646 = vld [vmem:[#allocation10 + $0x7c8] sm:$0xff]
      %v647 = vld [vmem:[#allocation10 + $0x7d0] sm:$0xff]
      %v648 = vld [vmem:[#allocation10 + $0x7d8] sm:$0xff]
      %v649 = vld [vmem:[#allocation10 + $0x7e0] sm:$0xff]
      %v650 = vld [vmem:[#allocation10 + $0x7e8] sm:$0xff]
      %v651 = vld [vmem:[#allocation10 + $0x7f0] sm:$0xff]
      %v652 = vld [vmem:[#allocation10 + $0x7f8] sm:$0xff]
      %v653 = vld [vmem:[#allocation10 + $0x800] sm:$0xff]
      %v654 = vld [vmem:[#allocation10 + $0x808] sm:$0xff]
      %v655 = vld [vmem:[#allocation10 + $0x810] sm:$0xff]
      %v656 = vld [vmem:[#allocation10 + $0x818] sm:$0xff]
      %v657 = vld [vmem:[#allocation10 + $0x820] sm:$0xff]
      %v658 = vld [vmem:[#allocation10 + $0x828] sm:$0xff]
      %v659 = vld [vmem:[#allocation10 + $0x830] sm:$0xff]
      %v660 = vld [vmem:[#allocation10 + $0x838] sm:$0xff]
      %v661 = vld [vmem:[#allocation10 + $0x840] sm:$0xff]
      %v662 = vld [vmem:[#allocation10 + $0x848] sm:$0xff]
      %v663 = vld [vmem:[#allocation10 + $0x850] sm:$0xff]
      %v664 = vld [vmem:[#allocation10 + $0x858] sm:$0xff]
      %v665 = vld [vmem:[#allocation10 + $0x860] sm:$0xff]
      %v666 = vld [vmem:[#allocation10 + $0x868] sm:$0xff]
      %v667 = vld [vmem:[#allocation10 + $0x870] sm:$0xff]
      %v668 = vld [vmem:[#allocation10 + $0x878] sm:$0xff]
      %v669 = vld [vmem:[#allocation10 + $0x880] sm:$0xff]
      %v670 = vld [vmem:[#allocation10 + $0x888] sm:$0xff]
      %v671 = vld [vmem:[#allocation10 + $0x890] sm:$0xff]
      %v672 = vld [vmem:[#allocation10 + $0x898] sm:$0xff]
      %v673 = vld [vmem:[#allocation10 + $0x8a0] sm:$0xff]
      %v674 = vld [vmem:[#allocation10 + $0x8a8] sm:$0xff]
      %v675 = vld [vmem:[#allocation10 + $0x8b0] sm:$0xff]
      %v676 = vld [vmem:[#allocation10 + $0x8b8] sm:$0xff]
      %v677 = vld [vmem:[#allocation10 + $0x8c0] sm:$0xff]
      %v678 = vld [vmem:[#allocation10 + $0x8c8] sm:$0xff]
      %v679 = vld [vmem:[#allocation10 + $0x8d0] sm:$0xff]
      %v680 = vld [vmem:[#allocation10 + $0x8d8] sm:$0xff]
      %v681 = vld [vmem:[#allocation10 + $0x8e0] sm:$0xff]
      %v682 = vld [vmem:[#allocation10 + $0x8e8] sm:$0xff]
      %v683 = vld [vmem:[#allocation10 + $0x8f0] sm:$0xff]
      %v684 = vld [vmem:[#allocation10 + $0x8f8] sm:$0xff]
      %v685 = vld [vmem:[#allocation10 + $0x900] sm:$0xff]
      %v686 = vld [vmem:[#allocation10 + $0x908] sm:$0xff]
      %v687 = vld [vmem:[#allocation10 + $0x910] sm:$0xff]
      %v688 = vld [vmem:[#allocation10 + $0x918] sm:$0xff]
      %v689 = vld [vmem:[#allocation10 + $0x920] sm:$0xff]
      %v690 = vld [vmem:[#allocation10 + $0x928] sm:$0xff]
      %v691 = vld [vmem:[#allocation10 + $0x930] sm:$0xff]
      %v692 = vld [vmem:[#allocation10 + $0x938] sm:$0xff]
      %v693 = vld [vmem:[#allocation10 + $0x940] sm:$0xff]
      %v694 = vld [vmem:[#allocation10 + $0x948] sm:$0xff]
      %v695 = vld [vmem:[#allocation10 + $0x950] sm:$0xff]
      %v696 = vld [vmem:[#allocation10 + $0x958] sm:$0xff]
      %v697 = vld [vmem:[#allocation10 + $0x960] sm:$0xff]
      %v698 = vld [vmem:[#allocation10 + $0x968] sm:$0xff]
      %v699 = vld [vmem:[#allocation10 + $0x970] sm:$0xff]
      %v700 = vld [vmem:[#allocation10 + $0x978] sm:$0xff]
      %v701 = vld [vmem:[#allocation10 + $0x980] sm:$0xff]
      %v702 = vld [vmem:[#allocation10 + $0x988] sm:$0xff]
      %v703 = vld [vmem:[#allocation10 + $0x990] sm:$0xff]
      %v704 = vld [vmem:[#allocation10 + $0x998] sm:$0xff]
      %v705 = vld [vmem:[#allocation10 + $0x9a0] sm:$0xff]
      %v706 = vld [vmem:[#allocation10 + $0x9a8] sm:$0xff]
      %v707 = vld [vmem:[#allocation10 + $0x9b0] sm:$0xff]
      %v708 = vld [vmem:[#allocation10 + $0x9b8] sm:$0xff]
      %v709 = vld [vmem:[#allocation10 + $0x9c0] sm:$0xff]
      %v710 = vld [vmem:[#allocation10 + $0x9c8] sm:$0xff]
      %v711 = vld [vmem:[#allocation10 + $0x9d0] sm:$0xff]
      %v712 = vld [vmem:[#allocation10 + $0x9d8] sm:$0xff]
      %v713 = vld [vmem:[#allocation10 + $0x9e0] sm:$0xff]
      %v714 = vld [vmem:[#allocation10 + $0x9e8] sm:$0xff]
      %v715 = vld [vmem:[#allocation10 + $0x9f0] sm:$0xff]
      %v716 = vld [vmem:[#allocation10 + $0x9f8] sm:$0xff]
      %v717 = vld [vmem:[#allocation10 + $0xa00] sm:$0xff]
      %v718 = vld [vmem:[#allocation10 + $0xa08] sm:$0xff]
      %v719 = vld [vmem:[#allocation10 + $0xa10] sm:$0xff]
      %v720 = vld [vmem:[#allocation10 + $0xa18] sm:$0xff]
      %v721 = vld [vmem:[#allocation10 + $0xa20] sm:$0xff]
      %v722 = vld [vmem:[#allocation10 + $0xa28] sm:$0xff]
      %v723 = vld [vmem:[#allocation10 + $0xa30] sm:$0xff]
      %v724 = vld [vmem:[#allocation10 + $0xa38] sm:$0xff]
      %v725 = vld [vmem:[#allocation10 + $0xa40] sm:$0xff]
      %v726 = vld [vmem:[#allocation10 + $0xa48] sm:$0xff]
      %v727 = vld [vmem:[#allocation10 + $0xa50] sm:$0xff]
      %v728 = vld [vmem:[#allocation10 + $0xa58] sm:$0xff]
      %v729 = vld [vmem:[#allocation10 + $0xa60] sm:$0xff]
      %v730 = vld [vmem:[#allocation10 + $0xa68] sm:$0xff]
      %v731 = vld [vmem:[#allocation10 + $0xa70] sm:$0xff]
      %v732 = vld [vmem:[#allocation10 + $0xa78] sm:$0xff]
      %v733 = vld [vmem:[#allocation10 + $0xa80] sm:$0xff]
      %v734 = vld [vmem:[#allocation10 + $0xa88] sm:$0xff]
      %v735 = vld [vmem:[#allocation10 + $0xa90] sm:$0xff]
      %v736 = vld [vmem:[#allocation10 + $0xa98] sm:$0xff]
      %v737 = vld [vmem:[#allocation10 + $0xaa0] sm:$0xff]
      %v738 = vld [vmem:[#allocation10 + $0xaa8] sm:$0xff]
      %v739 = vld [vmem:[#allocation10 + $0xab0] sm:$0xff]
      %v740 = vld [vmem:[#allocation10 + $0xab8] sm:$0xff]
      %v741 = vld [vmem:[#allocation10 + $0xac0] sm:$0xff]
      %v742 = vld [vmem:[#allocation10 + $0xac8] sm:$0xff]
      %v743 = vld [vmem:[#allocation10 + $0xad0] sm:$0xff]
      %v744 = vld [vmem:[#allocation10 + $0xad8] sm:$0xff]
      %v745 = vld [vmem:[#allocation10 + $0xae0] sm:$0xff]
      %v746 = vld [vmem:[#allocation10 + $0xae8] sm:$0xff]
      %v747 = vld [vmem:[#allocation10 + $0xaf0] sm:$0xff]
      %v748 = vld [vmem:[#allocation10 + $0xaf8] sm:$0xff]
      %v749 = vld [vmem:[#allocation10 + $0xb00] sm:$0xff]
      %v750 = vld [vmem:[#allocation10 + $0xb08] sm:$0xff]
      %v751 = vld [vmem:[#allocation10 + $0xb10] sm:$0xff]
      %v752 = vld [vmem:[#allocation10 + $0xb18] sm:$0xff]
      %v753 = vld [vmem:[#allocation10 + $0xb20] sm:$0xff]
      %v754 = vld [vmem:[#allocation10 + $0xb28] sm:$0xff]
      %v755 = vld [vmem:[#allocation10 + $0xb30] sm:$0xff]
      %v756 = vld [vmem:[#allocation10 + $0xb38] sm:$0xff]
      %v757 = vld [vmem:[#allocation10 + $0xb40] sm:$0xff]
      %v758 = vld [vmem:[#allocation10 + $0xb48] sm:$0xff]
      %v759 = vld [vmem:[#allocation10 + $0xb50] sm:$0xff]
      %v760 = vld [vmem:[#allocation10 + $0xb58] sm:$0xff]
      %v761 = vld [vmem:[#allocation10 + $0xb60] sm:$0xff]
      %v762 = vld [vmem:[#allocation10 + $0xb68] sm:$0xff]
      %v763 = vld [vmem:[#allocation10 + $0xb70] sm:$0xff]
      %v764 = vld [vmem:[#allocation10 + $0xb78] sm:$0xff]
      %v765 = vld [vmem:[#allocation10 + $0xb80] sm:$0xff]
      %v766 = vld [vmem:[#allocation10 + $0xb88] sm:$0xff]
      %v767 = vld [vmem:[#allocation10 + $0xb90] sm:$0xff]
      %v768 = vld [vmem:[#allocation10 + $0xb98] sm:$0xff]
      %v769 = vld [vmem:[#allocation10 + $0xba0] sm:$0xff]
      %v770 = vld [vmem:[#allocation10 + $0xba8] sm:$0xff]
      %v771 = vld [vmem:[#allocation10 + $0xbb0] sm:$0xff]
      %v772 = vld [vmem:[#allocation10 + $0xbb8] sm:$0xff]
      %v773 = vld [vmem:[#allocation10 + $0xbc0] sm:$0xff]
      %v774 = vld [vmem:[#allocation10 + $0xbc8] sm:$0xff]
      %v775 = vld [vmem:[#allocation10 + $0xbd0] sm:$0xff]
      %v776 = vld [vmem:[#allocation10 + $0xbd8] sm:$0xff]
      %v777 = vld [vmem:[#allocation10 + $0xbe0] sm:$0xff]
      %v778 = vld [vmem:[#allocation10 + $0xbe8] sm:$0xff]
      %v779 = vld [vmem:[#allocation10 + $0xbf0] sm:$0xff]
      %v780 = vld [vmem:[#allocation10 + $0xbf8] sm:$0xff]
      %v781 = vld [vmem:[#allocation10 + $0xc00] sm:$0xff]
      %v782 = vld [vmem:[#allocation10 + $0xc08] sm:$0xff]
      %v783 = vld [vmem:[#allocation10 + $0xc10] sm:$0xff]
      %v784 = vld [vmem:[#allocation10 + $0xc18] sm:$0xff]
      %v785 = vld [vmem:[#allocation10 + $0xc20] sm:$0xff]
      %v786 = vld [vmem:[#allocation10 + $0xc28] sm:$0xff]
      %v787 = vld [vmem:[#allocation10 + $0xc30] sm:$0xff]
      %v788 = vld [vmem:[#allocation10 + $0xc38] sm:$0xff]
      %v789 = vld [vmem:[#allocation10 + $0xc40] sm:$0xff]
      %v790 = vld [vmem:[#allocation10 + $0xc48] sm:$0xff]
      %v791 = vld [vmem:[#allocation10 + $0xc50] sm:$0xff]
      %v792 = vld [vmem:[#allocation10 + $0xc58] sm:$0xff]
      %v793 = vld [vmem:[#allocation10 + $0xc60] sm:$0xff]
      %v794 = vld [vmem:[#allocation10 + $0xc68] sm:$0xff]
      %v795 = vld [vmem:[#allocation10 + $0xc70] sm:$0xff]
      %v796 = vld [vmem:[#allocation10 + $0xc78] sm:$0xff]
      %v797 = vld [vmem:[#allocation10 + $0xc80] sm:$0xff]
      %v798 = vld [vmem:[#allocation10 + $0xc88] sm:$0xff]
      %v799 = vld [vmem:[#allocation10 + $0xc90] sm:$0xff]
      %v800 = vld [vmem:[#allocation10 + $0xc98] sm:$0xff]
      %v801 = vld [vmem:[#allocation10 + $0xca0] sm:$0xff]
      %v802 = vld [vmem:[#allocation10 + $0xca8] sm:$0xff]
      %v803 = vld [vmem:[#allocation10 + $0xcb0] sm:$0xff]
      %v804 = vld [vmem:[#allocation10 + $0xcb8] sm:$0xff]
      %v805 = vld [vmem:[#allocation10 + $0xcc0] sm:$0xff]
      %v806 = vld [vmem:[#allocation10 + $0xcc8] sm:$0xff]
      %v807 = vld [vmem:[#allocation10 + $0xcd0] sm:$0xff]
      %v808 = vld [vmem:[#allocation10 + $0xcd8] sm:$0xff]
      %v809 = vld [vmem:[#allocation10 + $0xce0] sm:$0xff]
      %v810 = vld [vmem:[#allocation10 + $0xce8] sm:$0xff]
      %v811 = vld [vmem:[#allocation10 + $0xcf0] sm:$0xff]
      %v812 = vld [vmem:[#allocation10 + $0xcf8] sm:$0xff]
      %v813 = vld [vmem:[#allocation10 + $0xd00] sm:$0xff]
      %v814 = vld [vmem:[#allocation10 + $0xd08] sm:$0xff]
      %v815 = vld [vmem:[#allocation10 + $0xd10] sm:$0xff]
      %v816 = vld [vmem:[#allocation10 + $0xd18] sm:$0xff]
      %v817 = vld [vmem:[#allocation10 + $0xd20] sm:$0xff]
      %v818 = vld [vmem:[#allocation10 + $0xd28] sm:$0xff]
      %v819 = vld [vmem:[#allocation10 + $0xd30] sm:$0xff]
      %v820 = vld [vmem:[#allocation10 + $0xd38] sm:$0xff]
      %v821 = vld [vmem:[#allocation10 + $0xd40] sm:$0xff]
      %v822 = vld [vmem:[#allocation10 + $0xd48] sm:$0xff]
      %v823 = vld [vmem:[#allocation10 + $0xd50] sm:$0xff]
      %v824 = vld [vmem:[#allocation10 + $0xd58] sm:$0xff]
      %v825 = vld [vmem:[#allocation10 + $0xd60] sm:$0xff]
      %v826 = vld [vmem:[#allocation10 + $0xd68] sm:$0xff]
      %v827 = vld [vmem:[#allocation10 + $0xd70] sm:$0xff]
      %v828 = vld [vmem:[#allocation10 + $0xd78] sm:$0xff]
      %v829 = vld [vmem:[#allocation10 + $0xd80] sm:$0xff]
      %v830 = vld [vmem:[#allocation10 + $0xd88] sm:$0xff]
      %v831 = vld [vmem:[#allocation10 + $0xd90] sm:$0xff]
      %v832 = vld [vmem:[#allocation10 + $0xd98] sm:$0xff]
      %v833 = vld [vmem:[#allocation10 + $0xda0] sm:$0xff]
      %v834 = vld [vmem:[#allocation10 + $0xda8] sm:$0xff]
      %v835 = vld [vmem:[#allocation10 + $0xdb0] sm:$0xff]
      %v836 = vld [vmem:[#allocation10 + $0xdb8] sm:$0xff]
      %v837 = vld [vmem:[#allocation10 + $0xdc0] sm:$0xff]
      %v838 = vld [vmem:[#allocation10 + $0xdc8] sm:$0xff]
      %v839 = vld [vmem:[#allocation10 + $0xdd0] sm:$0xff]
      %v840 = vld [vmem:[#allocation10 + $0xdd8] sm:$0xff]
      %v841 = vld [vmem:[#allocation10 + $0xde0] sm:$0xff]
      %v842 = vld [vmem:[#allocation10 + $0xde8] sm:$0xff]
      %v843 = vld [vmem:[#allocation10 + $0xdf0] sm:$0xff]
      %v844 = vld [vmem:[#allocation10 + $0xdf8] sm:$0xff]
      %v845 = vld [vmem:[#allocation10 + $0xe00] sm:$0xff]
      %v846 = vld [vmem:[#allocation10 + $0xe08] sm:$0xff]
      %v847 = vld [vmem:[#allocation10 + $0xe10] sm:$0xff]
      %v848 = vld [vmem:[#allocation10 + $0xe18] sm:$0xff]
      %v849 = vld [vmem:[#allocation10 + $0xe20] sm:$0xff]
      %v850 = vld [vmem:[#allocation10 + $0xe28] sm:$0xff]
      %v851 = vld [vmem:[#allocation10 + $0xe30] sm:$0xff]
      %v852 = vld [vmem:[#allocation10 + $0xe38] sm:$0xff]
      %v853 = vld [vmem:[#allocation10 + $0xe40] sm:$0xff]
      %v854 = vld [vmem:[#allocation10 + $0xe48] sm:$0xff]
      %v855 = vld [vmem:[#allocation10 + $0xe50] sm:$0xff]
      %v856 = vld [vmem:[#allocation10 + $0xe58] sm:$0xff]
      %v857 = vld [vmem:[#allocation10 + $0xe60] sm:$0xff]
      %v858 = vld [vmem:[#allocation10 + $0xe68] sm:$0xff]
      %v859 = vld [vmem:[#allocation10 + $0xe70] sm:$0xff]
      %v860 = vld [vmem:[#allocation10 + $0xe78] sm:$0xff]
      %v861 = vld [vmem:[#allocation10 + $0xe80] sm:$0xff]
      %v862 = vld [vmem:[#allocation10 + $0xe88] sm:$0xff]
      %v863 = vld [vmem:[#allocation10 + $0xe90] sm:$0xff]
      %v864 = vld [vmem:[#allocation10 + $0xe98] sm:$0xff]
      %v865 = vld [vmem:[#allocation10 + $0xea0] sm:$0xff]
      %v866 = vld [vmem:[#allocation10 + $0xea8] sm:$0xff]
      %v867 = vld [vmem:[#allocation10 + $0xeb0] sm:$0xff]
      %v868 = vld [vmem:[#allocation10 + $0xeb8] sm:$0xff]
      %v869 = vld [vmem:[#allocation10 + $0xec0] sm:$0xff]
      %v870 = vld [vmem:[#allocation10 + $0xec8] sm:$0xff]
      %v871 = vld [vmem:[#allocation10 + $0xed0] sm:$0xff]
      %v872 = vld [vmem:[#allocation10 + $0xed8] sm:$0xff]
      %v873 = vld [vmem:[#allocation10 + $0xee0] sm:$0xff]
      %v874 = vld [vmem:[#allocation10 + $0xee8] sm:$0xff]
      %v875 = vld [vmem:[#allocation10 + $0xef0] sm:$0xff]
      %v876 = vld [vmem:[#allocation10 + $0xef8] sm:$0xff]
      %v877 = vld [vmem:[#allocation10 + $0xf00] sm:$0xff]
      %v878 = vld [vmem:[#allocation10 + $0xf08] sm:$0xff]
      %v879 = vld [vmem:[#allocation10 + $0xf10] sm:$0xff]
      %v880 = vld [vmem:[#allocation10 + $0xf18] sm:$0xff]
      %v881 = vld [vmem:[#allocation10 + $0xf20] sm:$0xff]
      %v882 = vld [vmem:[#allocation10 + $0xf28] sm:$0xff]
      %v883 = vld [vmem:[#allocation10 + $0xf30] sm:$0xff]
      %v884 = vld [vmem:[#allocation10 + $0xf38] sm:$0xff]
      %v885 = vld [vmem:[#allocation10 + $0xf40] sm:$0xff]
      %v886 = vld [vmem:[#allocation10 + $0xf48] sm:$0xff]
      %v887 = vld [vmem:[#allocation10 + $0xf50] sm:$0xff]
      %v888 = vld [vmem:[#allocation10 + $0xf58] sm:$0xff]
      %v889 = vld [vmem:[#allocation10 + $0xf60] sm:$0xff]
      %v890 = vld [vmem:[#allocation10 + $0xf68] sm:$0xff]
      %v891 = vld [vmem:[#allocation10 + $0xf70] sm:$0xff]
      %v892 = vld [vmem:[#allocation10 + $0xf78] sm:$0xff]
      %v893 = vld [vmem:[#allocation10 + $0xf80] sm:$0xff]
      %v894 = vld [vmem:[#allocation10 + $0xf88] sm:$0xff]
      %v895 = vld [vmem:[#allocation10 + $0xf90] sm:$0xff]
      %v896 = vld [vmem:[#allocation10 + $0xf98] sm:$0xff]
      %v897 = vld [vmem:[#allocation10 + $0xfa0] sm:$0xff]
      %v898 = vld [vmem:[#allocation10 + $0xfa8] sm:$0xff]
      %v899 = vld [vmem:[#allocation10 + $0xfb0] sm:$0xff]
      %v900 = vld [vmem:[#allocation10 + $0xfb8] sm:$0xff]
      %v901 = vld [vmem:[#allocation10 + $0xfc0] sm:$0xff]
      %v902 = vld [vmem:[#allocation10 + $0xfc8] sm:$0xff]
      %v903 = vld [vmem:[#allocation10 + $0xfd0] sm:$0xff]
      %v904 = vld [vmem:[#allocation10 + $0xfd8] sm:$0xff]
      %v905 = vld [vmem:[#allocation10 + $0xfe0] sm:$0xff]
      %v906 = vld [vmem:[#allocation10 + $0xfe8] sm:$0xff]
      %v907 = vld [vmem:[#allocation10 + $0xff0] sm:$0xff]
      %v908 = vld [vmem:[#allocation10 + $0xff8] sm:$0xff]
      %v909 = vld [vmem:[#allocation10 + $0x1000] sm:$0xff]
      %v910 = vld [vmem:[#allocation10 + $0x1008] sm:$0xff]
      %v911 = vld [vmem:[#allocation10 + $0x1010] sm:$0xff]
      %v912 = vld [vmem:[#allocation10 + $0x1018] sm:$0xff]
      %v913 = vld [vmem:[#allocation10 + $0x1020] sm:$0xff]
      %v914 = vld [vmem:[#allocation10 + $0x1028] sm:$0xff]
      %v915 = vld [vmem:[#allocation10 + $0x1030] sm:$0xff]
      %v916 = vld [vmem:[#allocation10 + $0x1038] sm:$0xff]
      %v917 = vld [vmem:[#allocation10 + $0x1040] sm:$0xff]
      %v918 = vld [vmem:[#allocation10 + $0x1048] sm:$0xff]
      %v919 = vld [vmem:[#allocation10 + $0x1050] sm:$0xff]
      %v920 = vld [vmem:[#allocation10 + $0x1058] sm:$0xff]
      %v921 = vld [vmem:[#allocation10 + $0x1060] sm:$0xff]
      %v922 = vld [vmem:[#allocation10 + $0x1068] sm:$0xff]
      %v923 = vld [vmem:[#allocation10 + $0x1070] sm:$0xff]
      %v924 = vld [vmem:[#allocation10 + $0x1078] sm:$0xff]
      %v925 = vld [vmem:[#allocation10 + $0x1080] sm:$0xff]
      %v926 = vld [vmem:[#allocation10 + $0x1088] sm:$0xff]
      %v927 = vld [vmem:[#allocation10 + $0x1090] sm:$0xff]
      %v928 = vld [vmem:[#allocation10 + $0x1098] sm:$0xff]
      %v929 = vld [vmem:[#allocation10 + $0x10a0] sm:$0xff]
      %v930 = vld [vmem:[#allocation10 + $0x10a8] sm:$0xff]
      %v931 = vld [vmem:[#allocation10 + $0x10b0] sm:$0xff]
      %v932 = vld [vmem:[#allocation10 + $0x10b8] sm:$0xff]
      %v933 = vld [vmem:[#allocation10 + $0x10c0] sm:$0xff]
      %v934 = vld [vmem:[#allocation10 + $0x10c8] sm:$0xff]
      %v935 = vld [vmem:[#allocation10 + $0x10d0] sm:$0xff]
      %v936 = vld [vmem:[#allocation10 + $0x10d8] sm:$0xff]
      %v937 = vld [vmem:[#allocation10 + $0x10e0] sm:$0xff]
      %v938 = vld [vmem:[#allocation10 + $0x10e8] sm:$0xff]
      %v939 = vld [vmem:[#allocation10 + $0x10f0] sm:$0xff]
      %v940 = vld [vmem:[#allocation10 + $0x10f8] sm:$0xff]
      %v941 = vld [vmem:[#allocation10 + $0x1100] sm:$0xff]
      %v942 = vld [vmem:[#allocation10 + $0x1108] sm:$0xff]
      %v943 = vld [vmem:[#allocation10 + $0x1110] sm:$0xff]
      %v944 = vld [vmem:[#allocation10 + $0x1118] sm:$0xff]
      %v945 = vld [vmem:[#allocation10 + $0x1120] sm:$0xff]
      %v946 = vld [vmem:[#allocation10 + $0x1128] sm:$0xff]
      %v947 = vld [vmem:[#allocation10 + $0x1130] sm:$0xff]
      %v948 = vld [vmem:[#allocation10 + $0x1138] sm:$0xff]
      %v949 = vld [vmem:[#allocation10 + $0x1140] sm:$0xff]
      %v950 = vld [vmem:[#allocation10 + $0x1148] sm:$0xff]
      %v951 = vld [vmem:[#allocation10 + $0x1150] sm:$0xff]
      %v952 = vld [vmem:[#allocation10 + $0x1158] sm:$0xff]
      %v953 = vld [vmem:[#allocation10 + $0x1160] sm:$0xff]
      %v954 = vld [vmem:[#allocation10 + $0x1168] sm:$0xff]
      %v955 = vld [vmem:[#allocation10 + $0x1170] sm:$0xff]
      %v956 = vld [vmem:[#allocation10 + $0x1178] sm:$0xff]
      %v957 = vld [vmem:[#allocation10 + $0x1180] sm:$0xff]
      %v958 = vld [vmem:[#allocation10 + $0x1188] sm:$0xff]
      %v959 = vld [vmem:[#allocation10 + $0x1190] sm:$0xff]
      %v960 = vld [vmem:[#allocation10 + $0x1198] sm:$0xff]
      %v961 = vld [vmem:[#allocation10 + $0x11a0] sm:$0xff]
      %v962 = vld [vmem:[#allocation10 + $0x11a8] sm:$0xff]
      %v963 = vld [vmem:[#allocation10 + $0x11b0] sm:$0xff]
      %v964 = vld [vmem:[#allocation10 + $0x11b8] sm:$0xff]
      %v965 = vld [vmem:[#allocation10 + $0x11c0] sm:$0xff]
      %v966 = vld [vmem:[#allocation10 + $0x11c8] sm:$0xff]
      %v967 = vld [vmem:[#allocation10 + $0x11d0] sm:$0xff]
      %v968 = vld [vmem:[#allocation10 + $0x11d8] sm:$0xff]
      %v969 = vld [vmem:[#allocation10 + $0x11e0] sm:$0xff]
      %v970 = vld [vmem:[#allocation10 + $0x11e8] sm:$0xff]
      %v971 = vld [vmem:[#allocation10 + $0x11f0] sm:$0xff]
      %v972 = vld [vmem:[#allocation10 + $0x11f8] sm:$0xff]
      %v973 = vld [vmem:[#allocation11] sm:$0x3f]
      %v975 = vperm.slane %v973, 0
      %v976 = vperm.slane %v973, 1
      %v977 = vperm.slane %v973, 2
      %v978 = vperm.slane %v973, 3
      %v979 = vperm.slane %v973, 4
      %v980 = vperm.slane %v973, 5
      %989 = vst [vmem:[#allocation1] ss:$4 sm:$0xff] %v395
      %s990 = scalar_lea.vmem [#allocation1], 32
      %991 = vst [vmem:[%s990] ss:$4 sm:$0xff] %v396
      %v992 = vld.sshfl [vmem:[#allocation1] sm:$0xff pattern:$0x73625140]
      %v993 = vld.sshfl [vmem:[#allocation1 + $0x8] sm:$0xff pattern:$0x73625140]
      %v994 = vld.sshfl [vmem:[#allocation1 + $0x10] sm:$0xff pattern:$0x73625140]
      %v995 = vld.sshfl [vmem:[#allocation1 + $0x18] sm:$0xff pattern:$0x73625140]
      %v996 = vld.sshfl [vmem:[#allocation1 + $0x20] sm:$0xff pattern:$0x73625140]
      %v997 = vld.sshfl [vmem:[#allocation1 + $0x28] sm:$0xff pattern:$0x73625140]
      %1004 = vmatpush.msra.mxu0 %v487
      %1005 = vmatpush.msra.mxu0 %v481
      %1006 = vmatpush.msra.mxu0 %v475
      %1007 = vmatpush.msra.mxu0 %v469
      %1008 = vmatpush.msra.mxu0 %v463
      %1009 = vmatpush.msra.mxu0 %v457
      %1010 = vmatpush.msra.mxu0 %v451
      %1011 = vmatpush.msra.mxu0 %v445
      %1012 = vmatpush.msra.mxu0 %v439
      %1013 = vmatpush.msra.mxu0 %v433
      %1014 = vmatpush.msra.mxu0 %v427
      %1015 = vmatpush.msra.mxu0 %v421
      %1016 = vmatpush.msra.mxu0 %v415
      %1017 = vmatpush.msra.mxu0 %v409
      %1018 = vmatpush.msra.mxu0 %v403
      %1019 = vmatpush.msra.mxu0 %v397
      %1020 = vmatmul.f32.gmra.mxu0 %v992
      %v1021 = vpop.f32.mrf.mxu0
      %v1022 = vadd.f32 %v975, %v1021
      %1023 = vdwg.mxu0
      %1024 = vmatpush.msra.mxu0 %v583
      %1025 = vmatpush.msra.mxu0 %v577
      %1026 = vmatpush.msra.mxu0 %v571
      %1027 = vmatpush.msra.mxu0 %v565
      %1028 = vmatpush.msra.mxu0 %v559
      %1029 = vmatpush.msra.mxu0 %v553
      %1030 = vmatpush.msra.mxu0 %v547
      %1031 = vmatpush.msra.mxu0 %v541
      %1032 = vmatpush.msra.mxu0 %v535
      %1033 = vmatpush.msra.mxu0 %v529
      %1034 = vmatpush.msra.mxu0 %v523
      %1035 = vmatpush.msra.mxu0 %v517
      %1036 = vmatpush.msra.mxu0 %v511
      %1037 = vmatpush.msra.mxu0 %v505
      %1038 = vmatpush.msra.mxu0 %v499
      %1039 = vmatpush.msra.mxu0 %v493
      %1040 = vmatmul.f32.gmra.mxu0 %v993
      %v1041 = vpop.f32.mrf.mxu0
      %v1042 = vadd.f32 %v1022, %v1041
      %1043 = vdwg.mxu0
      %1044 = vmatpush.msra.mxu0 %v679
      %1045 = vmatpush.msra.mxu0 %v673
      %1046 = vmatpush.msra.mxu0 %v667
      %1047 = vmatpush.msra.mxu0 %v661
      %1048 = vmatpush.msra.mxu0 %v655
      %1049 = vmatpush.msra.mxu0 %v649
      %1050 = vmatpush.msra.mxu0 %v643
      %1051 = vmatpush.msra.mxu0 %v637
      %1052 = vmatpush.msra.mxu0 %v631
      %1053 = vmatpush.msra.mxu0 %v625
      %1054 = vmatpush.msra.mxu0 %v619
      %1055 = vmatpush.msra.mxu0 %v613
      %1056 = vmatpush.msra.mxu0 %v607
      %1057 = vmatpush.msra.mxu0 %v601
      %1058 = vmatpush.msra.mxu0 %v595
      %1059 = vmatpush.msra.mxu0 %v589
      %1060 = vmatmul.f32.gmra.mxu0 %v994
      %v1061 = vpop.f32.mrf.mxu0
      %v1062 = vadd.f32 %v1042, %v1061
      %1063 = vdwg.mxu0
      %1064 = vmatpush.msra.mxu0 %v775
      %1065 = vmatpush.msra.mxu0 %v769
      %1066 = vmatpush.msra.mxu0 %v763
      %1067 = vmatpush.msra.mxu0 %v757
      %1068 = vmatpush.msra.mxu0 %v751
      %1069 = vmatpush.msra.mxu0 %v745
      %1070 = vmatpush.msra.mxu0 %v739
      %1071 = vmatpush.msra.mxu0 %v733
      %1072 = vmatpush.msra.mxu0 %v727
      %1073 = vmatpush.msra.mxu0 %v721
      %1074 = vmatpush.msra.mxu0 %v715
      %1075 = vmatpush.msra.mxu0 %v709
      %1076 = vmatpush.msra.mxu0 %v703
      %1077 = vmatpush.msra.mxu0 %v697
      %1078 = vmatpush.msra.mxu0 %v691
      %1079 = vmatpush.msra.mxu0 %v685
      %1080 = vmatmul.f32.gmra.mxu0 %v995
      %v1081 = vpop.f32.mrf.mxu0
      %v1082 = vadd.f32 %v1062, %v1081
      %1083 = vdwg.mxu0
      %1084 = vmatpush.msra.mxu0 %v871
      %1085 = vmatpush.msra.mxu0 %v865
      %1086 = vmatpush.msra.mxu0 %v859
      %1087 = vmatpush.msra.mxu0 %v853
      %1088 = vmatpush.msra.mxu0 %v847
      %1089 = vmatpush.msra.mxu0 %v841
      %1090 = vmatpush.msra.mxu0 %v835
      %1091 = vmatpush.msra.mxu0 %v829
      %1092 = vmatpush.msra.mxu0 %v823
      %1093 = vmatpush.msra.mxu0 %v817
      %1094 = vmatpush.msra.mxu0 %v811
      %1095 = vmatpush.msra.mxu0 %v805
      %1096 = vmatpush.msra.mxu0 %v799
      %1097 = vmatpush.msra.mxu0 %v793
      %1098 = vmatpush.msra.mxu0 %v787
      %1099 = vmatpush.msra.mxu0 %v781
      %1100 = vmatmul.f32.gmra.mxu0 %v996
      %v1101 = vpop.f32.mrf.mxu0
      %v1102 = vadd.f32 %v1082, %v1101
      %1103 = vdwg.mxu0
      %1104 = vmatpush.msra.mxu0 %v967
      %1105 = vmatpush.msra.mxu0 %v961
      %1106 = vmatpush.msra.mxu0 %v955
      %1107 = vmatpush.msra.mxu0 %v949
      %1108 = vmatpush.msra.mxu0 %v943
      %1109 = vmatpush.msra.mxu0 %v937
      %1110 = vmatpush.msra.mxu0 %v931
      %1111 = vmatpush.msra.mxu0 %v925
      %1112 = vmatpush.msra.mxu0 %v919
      %1113 = vmatpush.msra.mxu0 %v913
      %1114 = vmatpush.msra.mxu0 %v907
      %1115 = vmatpush.msra.mxu0 %v901
      %1116 = vmatpush.msra.mxu0 %v895
      %1117 = vmatpush.msra.mxu0 %v889
      %1118 = vmatpush.msra.mxu0 %v883
      %1119 = vmatpush.msra.mxu0 %v877
      %1120 = vmatmul.f32.gmra.mxu0 %v997
      %v1121 = vpop.f32.mrf.mxu0
      %v1122 = vadd.f32 %v1102, %v1121
      %1123 = vdwg.mxu0
      %1124 = vmatpush.msra.mxu0 %v488
      %1125 = vmatpush.msra.mxu0 %v482
      %1126 = vmatpush.msra.mxu0 %v476
      %1127 = vmatpush.msra.mxu0 %v470
      %1128 = vmatpush.msra.mxu0 %v464
      %1129 = vmatpush.msra.mxu0 %v458
      %1130 = vmatpush.msra.mxu0 %v452
      %1131 = vmatpush.msra.mxu0 %v446
      %1132 = vmatpush.msra.mxu0 %v440
      %1133 = vmatpush.msra.mxu0 %v434
      %1134 = vmatpush.msra.mxu0 %v428
      %1135 = vmatpush.msra.mxu0 %v422
      %1136 = vmatpush.msra.mxu0 %v416
      %1137 = vmatpush.msra.mxu0 %v410
      %1138 = vmatpush.msra.mxu0 %v404
      %1139 = vmatpush.msra.mxu0 %v398
      %1140 = vmatmul.f32.gmra.mxu0 %v992
      %v1141 = vpop.f32.mrf.mxu0
      %v1142 = vadd.f32 %v976, %v1141
      %1143 = vdwg.mxu0
      %1144 = vmatpush.msra.mxu0 %v584
      %1145 = vmatpush.msra.mxu0 %v578
      %1146 = vmatpush.msra.mxu0 %v572
      %1147 = vmatpush.msra.mxu0 %v566
      %1148 = vmatpush.msra.mxu0 %v560
      %1149 = vmatpush.msra.mxu0 %v554
      %1150 = vmatpush.msra.mxu0 %v548
      %1151 = vmatpush.msra.mxu0 %v542
      %1152 = vmatpush.msra.mxu0 %v536
      %1153 = vmatpush.msra.mxu0 %v530
      %1154 = vmatpush.msra.mxu0 %v524
      %1155 = vmatpush.msra.mxu0 %v518
      %1156 = vmatpush.msra.mxu0 %v512
      %1157 = vmatpush.msra.mxu0 %v506
      %1158 = vmatpush.msra.mxu0 %v500
      %1159 = vmatpush.msra.mxu0 %v494
      %1160 = vmatmul.f32.gmra.mxu0 %v993
      %v1161 = vpop.f32.mrf.mxu0
      %v1162 = vadd.f32 %v1142, %v1161
      %1163 = vdwg.mxu0
      %1164 = vmatpush.msra.mxu0 %v680
      %1165 = vmatpush.msra.mxu0 %v674
      %1166 = vmatpush.msra.mxu0 %v668
      %1167 = vmatpush.msra.mxu0 %v662
      %1168 = vmatpush.msra.mxu0 %v656
      %1169 = vmatpush.msra.mxu0 %v650
      %1170 = vmatpush.msra.mxu0 %v644
      %1171 = vmatpush.msra.mxu0 %v638
      %1172 = vmatpush.msra.mxu0 %v632
      %1173 = vmatpush.msra.mxu0 %v626
      %1174 = vmatpush.msra.mxu0 %v620
      %1175 = vmatpush.msra.mxu0 %v614
      %1176 = vmatpush.msra.mxu0 %v608
      %1177 = vmatpush.msra.mxu0 %v602
      %1178 = vmatpush.msra.mxu0 %v596
      %1179 = vmatpush.msra.mxu0 %v590
      %1180 = vmatmul.f32.gmra.mxu0 %v994
      %v1181 = vpop.f32.mrf.mxu0
      %v1182 = vadd.f32 %v1162, %v1181
      %1183 = vdwg.mxu0
      %1184 = vmatpush.msra.mxu0 %v776
      %1185 = vmatpush.msra.mxu0 %v770
      %1186 = vmatpush.msra.mxu0 %v764
      %1187 = vmatpush.msra.mxu0 %v758
      %1188 = vmatpush.msra.mxu0 %v752
      %1189 = vmatpush.msra.mxu0 %v746
      %1190 = vmatpush.msra.mxu0 %v740
      %1191 = vmatpush.msra.mxu0 %v734
      %1192 = vmatpush.msra.mxu0 %v728
      %1193 = vmatpush.msra.mxu0 %v722
      %1194 = vmatpush.msra.mxu0 %v716
      %1195 = vmatpush.msra.mxu0 %v710
      %1196 = vmatpush.msra.mxu0 %v704
      %1197 = vmatpush.msra.mxu0 %v698
      %1198 = vmatpush.msra.mxu0 %v692
      %1199 = vmatpush.msra.mxu0 %v686
      %1200 = vmatmul.f32.gmra.mxu0 %v995
      %v1201 = vpop.f32.mrf.mxu0
      %v1202 = vadd.f32 %v1182, %v1201
      %1203 = vdwg.mxu0
      %1204 = vmatpush.msra.mxu0 %v872
      %1205 = vmatpush.msra.mxu0 %v866
      %1206 = vmatpush.msra.mxu0 %v860
      %1207 = vmatpush.msra.mxu0 %v854
      %1208 = vmatpush.msra.mxu0 %v848
      %1209 = vmatpush.msra.mxu0 %v842
      %1210 = vmatpush.msra.mxu0 %v836
      %1211 = vmatpush.msra.mxu0 %v830
      %1212 = vmatpush.msra.mxu0 %v824
      %1213 = vmatpush.msra.mxu0 %v818
      %1214 = vmatpush.msra.mxu0 %v812
      %1215 = vmatpush.msra.mxu0 %v806
      %1216 = vmatpush.msra.mxu0 %v800
      %1217 = vmatpush.msra.mxu0 %v794
      %1218 = vmatpush.msra.mxu0 %v788
      %1219 = vmatpush.msra.mxu0 %v782
      %1220 = vmatmul.f32.gmra.mxu0 %v996
      %v1221 = vpop.f32.mrf.mxu0
      %v1222 = vadd.f32 %v1202, %v1221
      %1223 = vdwg.mxu0
      %1224 = vmatpush.msra.mxu0 %v968
      %1225 = vmatpush.msra.mxu0 %v962
      %1226 = vmatpush.msra.mxu0 %v956
      %1227 = vmatpush.msra.mxu0 %v950
      %1228 = vmatpush.msra.mxu0 %v944
      %1229 = vmatpush.msra.mxu0 %v938
      %1230 = vmatpush.msra.mxu0 %v932
      %1231 = vmatpush.msra.mxu0 %v926
      %1232 = vmatpush.msra.mxu0 %v920
      %1233 = vmatpush.msra.mxu0 %v914
      %1234 = vmatpush.msra.mxu0 %v908
      %1235 = vmatpush.msra.mxu0 %v902
      %1236 = vmatpush.msra.mxu0 %v896
      %1237 = vmatpush.msra.mxu0 %v890
      %1238 = vmatpush.msra.mxu0 %v884
      %1239 = vmatpush.msra.mxu0 %v878
      %1240 = vmatmul.f32.gmra.mxu0 %v997
      %v1241 = vpop.f32.mrf.mxu0
      %v1242 = vadd.f32 %v1222, %v1241
      %1243 = vdwg.mxu0
      %1244 = vmatpush.msra.mxu0 %v489
      %1245 = vmatpush.msra.mxu0 %v483
      %1246 = vmatpush.msra.mxu0 %v477
      %1247 = vmatpush.msra.mxu0 %v471
      %1248 = vmatpush.msra.mxu0 %v465
      %1249 = vmatpush.msra.mxu0 %v459
      %1250 = vmatpush.msra.mxu0 %v453
      %1251 = vmatpush.msra.mxu0 %v447
      %1252 = vmatpush.msra.mxu0 %v441
      %1253 = vmatpush.msra.mxu0 %v435
      %1254 = vmatpush.msra.mxu0 %v429
      %1255 = vmatpush.msra.mxu0 %v423
      %1256 = vmatpush.msra.mxu0 %v417
      %1257 = vmatpush.msra.mxu0 %v411
      %1258 = vmatpush.msra.mxu0 %v405
      %1259 = vmatpush.msra.mxu0 %v399
      %1260 = vmatmul.f32.gmra.mxu0 %v992
      %v1261 = vpop.f32.mrf.mxu0
      %v1262 = vadd.f32 %v977, %v1261
      %1263 = vdwg.mxu0
      %1264 = vmatpush.msra.mxu0 %v585
      %1265 = vmatpush.msra.mxu0 %v579
      %1266 = vmatpush.msra.mxu0 %v573
      %1267 = vmatpush.msra.mxu0 %v567
      %1268 = vmatpush.msra.mxu0 %v561
      %1269 = vmatpush.msra.mxu0 %v555
      %1270 = vmatpush.msra.mxu0 %v549
      %1271 = vmatpush.msra.mxu0 %v543
      %1272 = vmatpush.msra.mxu0 %v537
      %1273 = vmatpush.msra.mxu0 %v531
      %1274 = vmatpush.msra.mxu0 %v525
      %1275 = vmatpush.msra.mxu0 %v519
      %1276 = vmatpush.msra.mxu0 %v513
      %1277 = vmatpush.msra.mxu0 %v507
      %1278 = vmatpush.msra.mxu0 %v501
      %1279 = vmatpush.msra.mxu0 %v495
      %1280 = vmatmul.f32.gmra.mxu0 %v993
      %v1281 = vpop.f32.mrf.mxu0
      %v1282 = vadd.f32 %v1262, %v1281
      %1283 = vdwg.mxu0
      %1284 = vmatpush.msra.mxu0 %v681
      %1285 = vmatpush.msra.mxu0 %v675
      %1286 = vmatpush.msra.mxu0 %v669
      %1287 = vmatpush.msra.mxu0 %v663
      %1288 = vmatpush.msra.mxu0 %v657
      %1289 = vmatpush.msra.mxu0 %v651
      %1290 = vmatpush.msra.mxu0 %v645
      %1291 = vmatpush.msra.mxu0 %v639
      %1292 = vmatpush.msra.mxu0 %v633
      %1293 = vmatpush.msra.mxu0 %v627
      %1294 = vmatpush.msra.mxu0 %v621
      %1295 = vmatpush.msra.mxu0 %v615
      %1296 = vmatpush.msra.mxu0 %v609
      %1297 = vmatpush.msra.mxu0 %v603
      %1298 = vmatpush.msra.mxu0 %v597
      %1299 = vmatpush.msra.mxu0 %v591
      %1300 = vmatmul.f32.gmra.mxu0 %v994
      %v1301 = vpop.f32.mrf.mxu0
      %v1302 = vadd.f32 %v1282, %v1301
      %1303 = vdwg.mxu0
      %1304 = vmatpush.msra.mxu0 %v777
      %1305 = vmatpush.msra.mxu0 %v771
      %1306 = vmatpush.msra.mxu0 %v765
      %1307 = vmatpush.msra.mxu0 %v759
      %1308 = vmatpush.msra.mxu0 %v753
      %1309 = vmatpush.msra.mxu0 %v747
      %1310 = vmatpush.msra.mxu0 %v741
      %1311 = vmatpush.msra.mxu0 %v735
      %1312 = vmatpush.msra.mxu0 %v729
      %1313 = vmatpush.msra.mxu0 %v723
      %1314 = vmatpush.msra.mxu0 %v717
      %1315 = vmatpush.msra.mxu0 %v711
      %1316 = vmatpush.msra.mxu0 %v705
      %1317 = vmatpush.msra.mxu0 %v699
      %1318 = vmatpush.msra.mxu0 %v693
      %1319 = vmatpush.msra.mxu0 %v687
      %1320 = vmatmul.f32.gmra.mxu0 %v995
      %v1321 = vpop.f32.mrf.mxu0
      %v1322 = vadd.f32 %v1302, %v1321
      %1323 = vdwg.mxu0
      %1324 = vmatpush.msra.mxu0 %v873
      %1325 = vmatpush.msra.mxu0 %v867
      %1326 = vmatpush.msra.mxu0 %v861
      %1327 = vmatpush.msra.mxu0 %v855
      %1328 = vmatpush.msra.mxu0 %v849
      %1329 = vmatpush.msra.mxu0 %v843
      %1330 = vmatpush.msra.mxu0 %v837
      %1331 = vmatpush.msra.mxu0 %v831
      %1332 = vmatpush.msra.mxu0 %v825
      %1333 = vmatpush.msra.mxu0 %v819
      %1334 = vmatpush.msra.mxu0 %v813
      %1335 = vmatpush.msra.mxu0 %v807
      %1336 = vmatpush.msra.mxu0 %v801
      %1337 = vmatpush.msra.mxu0 %v795
      %1338 = vmatpush.msra.mxu0 %v789
      %1339 = vmatpush.msra.mxu0 %v783
      %1340 = vmatmul.f32.gmra.mxu0 %v996
      %v1341 = vpop.f32.mrf.mxu0
      %v1342 = vadd.f32 %v1322, %v1341
      %1343 = vdwg.mxu0
      %1344 = vmatpush.msra.mxu0 %v969
      %1345 = vmatpush.msra.mxu0 %v963
      %1346 = vmatpush.msra.mxu0 %v957
      %1347 = vmatpush.msra.mxu0 %v951
      %1348 = vmatpush.msra.mxu0 %v945
      %1349 = vmatpush.msra.mxu0 %v939
      %1350 = vmatpush.msra.mxu0 %v933
      %1351 = vmatpush.msra.mxu0 %v927
      %1352 = vmatpush.msra.mxu0 %v921
      %1353 = vmatpush.msra.mxu0 %v915
      %1354 = vmatpush.msra.mxu0 %v909
      %1355 = vmatpush.msra.mxu0 %v903
      %1356 = vmatpush.msra.mxu0 %v897
      %1357 = vmatpush.msra.mxu0 %v891
      %1358 = vmatpush.msra.mxu0 %v885
      %1359 = vmatpush.msra.mxu0 %v879
      %1360 = vmatmul.f32.gmra.mxu0 %v997
      %v1361 = vpop.f32.mrf.mxu0
      %v1362 = vadd.f32 %v1342, %v1361
      %1363 = vdwg.mxu0
      %1364 = vmatpush.msra.mxu0 %v490
      %1365 = vmatpush.msra.mxu0 %v484
      %1366 = vmatpush.msra.mxu0 %v478
      %1367 = vmatpush.msra.mxu0 %v472
      %1368 = vmatpush.msra.mxu0 %v466
      %1369 = vmatpush.msra.mxu0 %v460
      %1370 = vmatpush.msra.mxu0 %v454
      %1371 = vmatpush.msra.mxu0 %v448
      %1372 = vmatpush.msra.mxu0 %v442
      %1373 = vmatpush.msra.mxu0 %v436
      %1374 = vmatpush.msra.mxu0 %v430
      %1375 = vmatpush.msra.mxu0 %v424
      %1376 = vmatpush.msra.mxu0 %v418
      %1377 = vmatpush.msra.mxu0 %v412
      %1378 = vmatpush.msra.mxu0 %v406
      %1379 = vmatpush.msra.mxu0 %v400
      %1380 = vmatmul.f32.gmra.mxu0 %v992
      %v1381 = vpop.f32.mrf.mxu0
      %v1382 = vadd.f32 %v978, %v1381
      %1383 = vdwg.mxu0
      %1384 = vmatpush.msra.mxu0 %v586
      %1385 = vmatpush.msra.mxu0 %v580
      %1386 = vmatpush.msra.mxu0 %v574
      %1387 = vmatpush.msra.mxu0 %v568
      %1388 = vmatpush.msra.mxu0 %v562
      %1389 = vmatpush.msra.mxu0 %v556
      %1390 = vmatpush.msra.mxu0 %v550
      %1391 = vmatpush.msra.mxu0 %v544
      %1392 = vmatpush.msra.mxu0 %v538
      %1393 = vmatpush.msra.mxu0 %v532
      %1394 = vmatpush.msra.mxu0 %v526
      %1395 = vmatpush.msra.mxu0 %v520
      %1396 = vmatpush.msra.mxu0 %v514
      %1397 = vmatpush.msra.mxu0 %v508
      %1398 = vmatpush.msra.mxu0 %v502
      %1399 = vmatpush.msra.mxu0 %v496
      %1400 = vmatmul.f32.gmra.mxu0 %v993
      %v1401 = vpop.f32.mrf.mxu0
      %v1402 = vadd.f32 %v1382, %v1401
      %1403 = vdwg.mxu0
      %1404 = vmatpush.msra.mxu0 %v682
      %1405 = vmatpush.msra.mxu0 %v676
      %1406 = vmatpush.msra.mxu0 %v670
      %1407 = vmatpush.msra.mxu0 %v664
      %1408 = vmatpush.msra.mxu0 %v658
      %1409 = vmatpush.msra.mxu0 %v652
      %1410 = vmatpush.msra.mxu0 %v646
      %1411 = vmatpush.msra.mxu0 %v640
      %1412 = vmatpush.msra.mxu0 %v634
      %1413 = vmatpush.msra.mxu0 %v628
      %1414 = vmatpush.msra.mxu0 %v622
      %1415 = vmatpush.msra.mxu0 %v616
      %1416 = vmatpush.msra.mxu0 %v610
      %1417 = vmatpush.msra.mxu0 %v604
      %1418 = vmatpush.msra.mxu0 %v598
      %1419 = vmatpush.msra.mxu0 %v592
      %1420 = vmatmul.f32.gmra.mxu0 %v994
      %v1421 = vpop.f32.mrf.mxu0
      %v1422 = vadd.f32 %v1402, %v1421
      %1423 = vdwg.mxu0
      %1424 = vmatpush.msra.mxu0 %v778
      %1425 = vmatpush.msra.mxu0 %v772
      %1426 = vmatpush.msra.mxu0 %v766
      %1427 = vmatpush.msra.mxu0 %v760
      %1428 = vmatpush.msra.mxu0 %v754
      %1429 = vmatpush.msra.mxu0 %v748
      %1430 = vmatpush.msra.mxu0 %v742
      %1431 = vmatpush.msra.mxu0 %v736
      %1432 = vmatpush.msra.mxu0 %v730
      %1433 = vmatpush.msra.mxu0 %v724
      %1434 = vmatpush.msra.mxu0 %v718
      %1435 = vmatpush.msra.mxu0 %v712
      %1436 = vmatpush.msra.mxu0 %v706
      %1437 = vmatpush.msra.mxu0 %v700
      %1438 = vmatpush.msra.mxu0 %v694
      %1439 = vmatpush.msra.mxu0 %v688
      %1440 = vmatmul.f32.gmra.mxu0 %v995
      %v1441 = vpop.f32.mrf.mxu0
      %v1442 = vadd.f32 %v1422, %v1441
      %1443 = vdwg.mxu0
      %1444 = vmatpush.msra.mxu0 %v874
      %1445 = vmatpush.msra.mxu0 %v868
      %1446 = vmatpush.msra.mxu0 %v862
      %1447 = vmatpush.msra.mxu0 %v856
      %1448 = vmatpush.msra.mxu0 %v850
      %1449 = vmatpush.msra.mxu0 %v844
      %1450 = vmatpush.msra.mxu0 %v838
      %1451 = vmatpush.msra.mxu0 %v832
      %1452 = vmatpush.msra.mxu0 %v826
      %1453 = vmatpush.msra.mxu0 %v820
      %1454 = vmatpush.msra.mxu0 %v814
      %1455 = vmatpush.msra.mxu0 %v808
      %1456 = vmatpush.msra.mxu0 %v802
      %1457 = vmatpush.msra.mxu0 %v796
      %1458 = vmatpush.msra.mxu0 %v790
      %1459 = vmatpush.msra.mxu0 %v784
      %1460 = vmatmul.f32.gmra.mxu0 %v996
      %v1461 = vpop.f32.mrf.mxu0
      %v1462 = vadd.f32 %v1442, %v1461
      %1463 = vdwg.mxu0
      %1464 = vmatpush.msra.mxu0 %v970
      %1465 = vmatpush.msra.mxu0 %v964
      %1466 = vmatpush.msra.mxu0 %v958
      %1467 = vmatpush.msra.mxu0 %v952
      %1468 = vmatpush.msra.mxu0 %v946
      %1469 = vmatpush.msra.mxu0 %v940
      %1470 = vmatpush.msra.mxu0 %v934
      %1471 = vmatpush.msra.mxu0 %v928
      %1472 = vmatpush.msra.mxu0 %v922
      %1473 = vmatpush.msra.mxu0 %v916
      %1474 = vmatpush.msra.mxu0 %v910
      %1475 = vmatpush.msra.mxu0 %v904
      %1476 = vmatpush.msra.mxu0 %v898
      %1477 = vmatpush.msra.mxu0 %v892
      %1478 = vmatpush.msra.mxu0 %v886
      %1479 = vmatpush.msra.mxu0 %v880
      %1480 = vmatmul.f32.gmra.mxu0 %v997
      %v1481 = vpop.f32.mrf.mxu0
      %v1482 = vadd.f32 %v1462, %v1481
      %1483 = vdwg.mxu0
      %1484 = vmatpush.msra.mxu0 %v491
      %1485 = vmatpush.msra.mxu0 %v485
      %1486 = vmatpush.msra.mxu0 %v479
      %1487 = vmatpush.msra.mxu0 %v473
      %1488 = vmatpush.msra.mxu0 %v467
      %1489 = vmatpush.msra.mxu0 %v461
      %1490 = vmatpush.msra.mxu0 %v455
      %1491 = vmatpush.msra.mxu0 %v449
      %1492 = vmatpush.msra.mxu0 %v443
      %1493 = vmatpush.msra.mxu0 %v437
      %1494 = vmatpush.msra.mxu0 %v431
      %1495 = vmatpush.msra.mxu0 %v425
      %1496 = vmatpush.msra.mxu0 %v419
      %1497 = vmatpush.msra.mxu0 %v413
      %1498 = vmatpush.msra.mxu0 %v407
      %1499 = vmatpush.msra.mxu0 %v401
      %1500 = vmatmul.f32.gmra.mxu0 %v992
      %v1501 = vpop.f32.mrf.mxu0
      %v1502 = vadd.f32 %v979, %v1501
      %1503 = vdwg.mxu0
      %1504 = vmatpush.msra.mxu0 %v587
      %1505 = vmatpush.msra.mxu0 %v581
      %1506 = vmatpush.msra.mxu0 %v575
      %1507 = vmatpush.msra.mxu0 %v569
      %1508 = vmatpush.msra.mxu0 %v563
      %1509 = vmatpush.msra.mxu0 %v557
      %1510 = vmatpush.msra.mxu0 %v551
      %1511 = vmatpush.msra.mxu0 %v545
      %1512 = vmatpush.msra.mxu0 %v539
      %1513 = vmatpush.msra.mxu0 %v533
      %1514 = vmatpush.msra.mxu0 %v527
      %1515 = vmatpush.msra.mxu0 %v521
      %1516 = vmatpush.msra.mxu0 %v515
      %1517 = vmatpush.msra.mxu0 %v509
      %1518 = vmatpush.msra.mxu0 %v503
      %1519 = vmatpush.msra.mxu0 %v497
      %1520 = vmatmul.f32.gmra.mxu0 %v993
      %v1521 = vpop.f32.mrf.mxu0
      %v1522 = vadd.f32 %v1502, %v1521
      %1523 = vdwg.mxu0
      %1524 = vmatpush.msra.mxu0 %v683
      %1525 = vmatpush.msra.mxu0 %v677
      %1526 = vmatpush.msra.mxu0 %v671
      %1527 = vmatpush.msra.mxu0 %v665
      %1528 = vmatpush.msra.mxu0 %v659
      %1529 = vmatpush.msra.mxu0 %v653
      %1530 = vmatpush.msra.mxu0 %v647
      %1531 = vmatpush.msra.mxu0 %v641
      %1532 = vmatpush.msra.mxu0 %v635
      %1533 = vmatpush.msra.mxu0 %v629
      %1534 = vmatpush.msra.mxu0 %v623
      %1535 = vmatpush.msra.mxu0 %v617
      %1536 = vmatpush.msra.mxu0 %v611
      %1537 = vmatpush.msra.mxu0 %v605
      %1538 = vmatpush.msra.mxu0 %v599
      %1539 = vmatpush.msra.mxu0 %v593
      %1540 = vmatmul.f32.gmra.mxu0 %v994
      %v1541 = vpop.f32.mrf.mxu0
      %v1542 = vadd.f32 %v1522, %v1541
      %1543 = vdwg.mxu0
      %1544 = vmatpush.msra.mxu0 %v779
      %1545 = vmatpush.msra.mxu0 %v773
      %1546 = vmatpush.msra.mxu0 %v767
      %1547 = vmatpush.msra.mxu0 %v761
      %1548 = vmatpush.msra.mxu0 %v755
      %1549 = vmatpush.msra.mxu0 %v749
      %1550 = vmatpush.msra.mxu0 %v743
      %1551 = vmatpush.msra.mxu0 %v737
      %1552 = vmatpush.msra.mxu0 %v731
      %1553 = vmatpush.msra.mxu0 %v725
      %1554 = vmatpush.msra.mxu0 %v719
      %1555 = vmatpush.msra.mxu0 %v713
      %1556 = vmatpush.msra.mxu0 %v707
      %1557 = vmatpush.msra.mxu0 %v701
      %1558 = vmatpush.msra.mxu0 %v695
      %1559 = vmatpush.msra.mxu0 %v689
      %1560 = vmatmul.f32.gmra.mxu0 %v995
      %v1561 = vpop.f32.mrf.mxu0
      %v1562 = vadd.f32 %v1542, %v1561
      %1563 = vdwg.mxu0
      %1564 = vmatpush.msra.mxu0 %v875
      %1565 = vmatpush.msra.mxu0 %v869
      %1566 = vmatpush.msra.mxu0 %v863
      %1567 = vmatpush.msra.mxu0 %v857
      %1568 = vmatpush.msra.mxu0 %v851
      %1569 = vmatpush.msra.mxu0 %v845
      %1570 = vmatpush.msra.mxu0 %v839
      %1571 = vmatpush.msra.mxu0 %v833
      %1572 = vmatpush.msra.mxu0 %v827
      %1573 = vmatpush.msra.mxu0 %v821
      %1574 = vmatpush.msra.mxu0 %v815
      %1575 = vmatpush.msra.mxu0 %v809
      %1576 = vmatpush.msra.mxu0 %v803
      %1577 = vmatpush.msra.mxu0 %v797
      %1578 = vmatpush.msra.mxu0 %v791
      %1579 = vmatpush.msra.mxu0 %v785
      %1580 = vmatmul.f32.gmra.mxu0 %v996
      %v1581 = vpop.f32.mrf.mxu0
      %v1582 = vadd.f32 %v1562, %v1581
      %1583 = vdwg.mxu0
      %1584 = vmatpush.msra.mxu0 %v971
      %1585 = vmatpush.msra.mxu0 %v965
      %1586 = vmatpush.msra.mxu0 %v959
      %1587 = vmatpush.msra.mxu0 %v953
      %1588 = vmatpush.msra.mxu0 %v947
      %1589 = vmatpush.msra.mxu0 %v941
      %1590 = vmatpush.msra.mxu0 %v935
      %1591 = vmatpush.msra.mxu0 %v929
      %1592 = vmatpush.msra.mxu0 %v923
      %1593 = vmatpush.msra.mxu0 %v917
      %1594 = vmatpush.msra.mxu0 %v911
      %1595 = vmatpush.msra.mxu0 %v905
      %1596 = vmatpush.msra.mxu0 %v899
      %1597 = vmatpush.msra.mxu0 %v893
      %1598 = vmatpush.msra.mxu0 %v887
      %1599 = vmatpush.msra.mxu0 %v881
      %1600 = vmatmul.f32.gmra.mxu0 %v997
      %v1601 = vpop.f32.mrf.mxu0
      %v1602 = vadd.f32 %v1582, %v1601
      %1603 = vdwg.mxu0
      %1604 = vmatpush.msra.mxu0 %v492
      %1605 = vmatpush.msra.mxu0 %v486
      %1606 = vmatpush.msra.mxu0 %v480
      %1607 = vmatpush.msra.mxu0 %v474
      %1608 = vmatpush.msra.mxu0 %v468
      %1609 = vmatpush.msra.mxu0 %v462
      %1610 = vmatpush.msra.mxu0 %v456
      %1611 = vmatpush.msra.mxu0 %v450
      %1612 = vmatpush.msra.mxu0 %v444
      %1613 = vmatpush.msra.mxu0 %v438
      %1614 = vmatpush.msra.mxu0 %v432
      %1615 = vmatpush.msra.mxu0 %v426
      %1616 = vmatpush.msra.mxu0 %v420
      %1617 = vmatpush.msra.mxu0 %v414
      %1618 = vmatpush.msra.mxu0 %v408
      %1619 = vmatpush.msra.mxu0 %v402
      %1620 = vmatmul.f32.gmra.mxu0 %v992
      %v1621 = vpop.f32.mrf.mxu0
      %v1622 = vadd.f32 %v980, %v1621
      %1623 = vdwg.mxu0
      %1624 = vmatpush.msra.mxu0 %v588
      %1625 = vmatpush.msra.mxu0 %v582
      %1626 = vmatpush.msra.mxu0 %v576
      %1627 = vmatpush.msra.mxu0 %v570
      %1628 = vmatpush.msra.mxu0 %v564
      %1629 = vmatpush.msra.mxu0 %v558
      %1630 = vmatpush.msra.mxu0 %v552
      %1631 = vmatpush.msra.mxu0 %v546
      %1632 = vmatpush.msra.mxu0 %v540
      %1633 = vmatpush.msra.mxu0 %v534
      %1634 = vmatpush.msra.mxu0 %v528
      %1635 = vmatpush.msra.mxu0 %v522
      %1636 = vmatpush.msra.mxu0 %v516
      %1637 = vmatpush.msra.mxu0 %v510
      %1638 = vmatpush.msra.mxu0 %v504
      %1639 = vmatpush.msra.mxu0 %v498
      %1640 = vmatmul.f32.gmra.mxu0 %v993
      %v1641 = vpop.f32.mrf.mxu0
      %v1642 = vadd.f32 %v1622, %v1641
      %1643 = vdwg.mxu0
      %1644 = vmatpush.msra.mxu0 %v684
      %1645 = vmatpush.msra.mxu0 %v678
      %1646 = vmatpush.msra.mxu0 %v672
      %1647 = vmatpush.msra.mxu0 %v666
      %1648 = vmatpush.msra.mxu0 %v660
      %1649 = vmatpush.msra.mxu0 %v654
      %1650 = vmatpush.msra.mxu0 %v648
      %1651 = vmatpush.msra.mxu0 %v642
      %1652 = vmatpush.msra.mxu0 %v636
      %1653 = vmatpush.msra.mxu0 %v630
      %1654 = vmatpush.msra.mxu0 %v624
      %1655 = vmatpush.msra.mxu0 %v618
      %1656 = vmatpush.msra.mxu0 %v612
      %1657 = vmatpush.msra.mxu0 %v606
      %1658 = vmatpush.msra.mxu0 %v600
      %1659 = vmatpush.msra.mxu0 %v594
      %1660 = vmatmul.f32.gmra.mxu0 %v994
      %v1661 = vpop.f32.mrf.mxu0
      %v1662 = vadd.f32 %v1642, %v1661
      %1663 = vdwg.mxu0
      %1664 = vmatpush.msra.mxu0 %v780
      %1665 = vmatpush.msra.mxu0 %v774
      %1666 = vmatpush.msra.mxu0 %v768
      %1667 = vmatpush.msra.mxu0 %v762
      %1668 = vmatpush.msra.mxu0 %v756
      %1669 = vmatpush.msra.mxu0 %v750
      %1670 = vmatpush.msra.mxu0 %v744
      %1671 = vmatpush.msra.mxu0 %v738
      %1672 = vmatpush.msra.mxu0 %v732
      %1673 = vmatpush.msra.mxu0 %v726
      %1674 = vmatpush.msra.mxu0 %v720
      %1675 = vmatpush.msra.mxu0 %v714
      %1676 = vmatpush.msra.mxu0 %v708
      %1677 = vmatpush.msra.mxu0 %v702
      %1678 = vmatpush.msra.mxu0 %v696
      %1679 = vmatpush.msra.mxu0 %v690
      %1680 = vmatmul.f32.gmra.mxu0 %v995
      %v1681 = vpop.f32.mrf.mxu0
      %v1682 = vadd.f32 %v1662, %v1681
      %1683 = vdwg.mxu0
      %1684 = vmatpush.msra.mxu0 %v876
      %1685 = vmatpush.msra.mxu0 %v870
      %1686 = vmatpush.msra.mxu0 %v864
      %1687 = vmatpush.msra.mxu0 %v858
      %1688 = vmatpush.msra.mxu0 %v852
      %1689 = vmatpush.msra.mxu0 %v846
      %1690 = vmatpush.msra.mxu0 %v840
      %1691 = vmatpush.msra.mxu0 %v834
      %1692 = vmatpush.msra.mxu0 %v828
      %1693 = vmatpush.msra.mxu0 %v822
      %1694 = vmatpush.msra.mxu0 %v816
      %1695 = vmatpush.msra.mxu0 %v810
      %1696 = vmatpush.msra.mxu0 %v804
      %1697 = vmatpush.msra.mxu0 %v798
      %1698 = vmatpush.msra.mxu0 %v792
      %1699 = vmatpush.msra.mxu0 %v786
      %1700 = vmatmul.f32.gmra.mxu0 %v996
      %v1701 = vpop.f32.mrf.mxu0
      %v1702 = vadd.f32 %v1682, %v1701
      %1703 = vdwg.mxu0
      %1704 = vmatpush.msra.mxu0 %v972
      %1705 = vmatpush.msra.mxu0 %v966
      %1706 = vmatpush.msra.mxu0 %v960
      %1707 = vmatpush.msra.mxu0 %v954
      %1708 = vmatpush.msra.mxu0 %v948
      %1709 = vmatpush.msra.mxu0 %v942
      %1710 = vmatpush.msra.mxu0 %v936
      %1711 = vmatpush.msra.mxu0 %v930
      %1712 = vmatpush.msra.mxu0 %v924
      %1713 = vmatpush.msra.mxu0 %v918
      %1714 = vmatpush.msra.mxu0 %v912
      %1715 = vmatpush.msra.mxu0 %v906
      %1716 = vmatpush.msra.mxu0 %v900
      %1717 = vmatpush.msra.mxu0 %v894
      %1718 = vmatpush.msra.mxu0 %v888
      %1719 = vmatpush.msra.mxu0 %v882
      %1720 = vmatmul.f32.gmra.mxu0 %v997
      %v1721 = vpop.f32.mrf.mxu0
      %v1722 = vadd.f32 %v1702, %v1721
      %1723 = vdwg.mxu0
      %1724 = vst [vmem:[#allocation1] ss:$4 sm:$0xff] %v395
      %s1725 = scalar_lea.vmem [#allocation1], 32
      %1726 = vst [vmem:[%s1725] ss:$4 sm:$0xff] %v396
      %v1727 = vld.sshfl [vmem:[#allocation1] sm:$0xff pattern:$0x73625140]
      %v1728 = vld.sshfl [vmem:[#allocation1 + $0x8] sm:$0xff pattern:$0x73625140]
      %v1729 = vld.sshfl [vmem:[#allocation1 + $0x10] sm:$0xff pattern:$0x73625140]
      %v1730 = vld.sshfl [vmem:[#allocation1 + $0x18] sm:$0xff pattern:$0x73625140]
      %v1731 = vld.sshfl [vmem:[#allocation1 + $0x20] sm:$0xff pattern:$0x73625140]
      %v1732 = vld.sshfl [vmem:[#allocation1 + $0x28] sm:$0xff pattern:$0x73625140]
      %v1739 = vadd.f32 %v1122, %v1727
      %v1740 = vadd.f32 %v1242, %v1728
      %v1741 = vadd.f32 %v1362, %v1729
      %v1742 = vadd.f32 %v1482, %v1730
      %v1743 = vadd.f32 %v1602, %v1731
      %v1744 = vadd.f32 %v1722, %v1732
      %v1745 = vld [vmem:[#allocation13] sm:$0x3f]
      %v1747 = vperm.slane %v1745, 0
      %v1748 = vperm.slane %v1745, 1
      %v1749 = vperm.slane %v1745, 2
      %v1750 = vperm.slane %v1745, 3
      %v1751 = vperm.slane %v1745, 4
      %v1752 = vperm.slane %v1745, 5
      %v1759 = vmul.f32 %v1739, %v1747
      %v1760 = vmul.f32 %v1740, %v1748
      %v1761 = vmul.f32 %v1741, %v1749
      %v1762 = vmul.f32 %v1742, %v1750
      %v1763 = vmul.f32 %v1743, %v1751
      %v1764 = vmul.f32 %v1744, %v1752
      %v1765 = vsel %vm215, %v1759, 0.0
      %v1766 = vsel %vm215, %v1760, 0.0
      %v1767 = vadd.f32 %v1765, %v1766
      %v1768 = vsel %vm215, %v1761, 0.0
      %v1769 = vadd.f32 %v1767, %v1768
      %v1770 = vsel %vm215, %v1762, 0.0
      %v1771 = vadd.f32 %v1769, %v1770
      %v1772 = vsel %vm215, %v1763, 0.0
      %v1773 = vadd.f32 %v1771, %v1772
      %v1774 = vsel %vm215, %v1764, 0.0
      %v1775 = vadd.f32 %v1773, %v1774
      %1776 = vadd.xlane.f32.xlu0 %v1775
      %v1777 = vpop.xlane.xlu0 %1776
      %s1778 = sld [smem:[#allocation4]]
      %v1779 = vstv %s1778
      %v1780 = vadd.f32 %v1777, %v1779
      %v1787 = vrot.slane %v1740, 6
      %v1788 = vrot.slane %v1741, 4
      %v1789 = vrot.slane %v1742, 2
      %v1790 = vrot.slane %v1744, 6
      %v1791 = vsel %vm215, %v1739, %v1787
      %v1792 = vsel %vm217, %v1788, %v1789
      %v1793 = vsel %vm219, %v1791, %v1792
      %v1794 = vsel %vm215, %v1743, %v1790
      %1797 = vst [vmem:[#allocation14] sm:$0xff] %v1793
      %1798 = vst [vmem:[#allocation14 + $0x8] sm:$0xf] %v1794
      %vm1799 = vcmask 1024
      %1800 = vst.msk [vmem:[%s6] sm:$0x3] %vm1799, %v1780
    $region53: #{tpu_custom_call.1} parent=1 // pred_fallthru
      _
    // Predicated region
    $region54: #{tpu_custom_call.1} parent=1 // pred_check
      _
    $region55: #{tpu_custom_call.1} parent=1 // pred_check_branch
      %1802 = sbr.rel (0) target = $region57
    $region56: #{tpu_custom_call.1} parent=1 // pred_region
      _
    $region57: #{tpu_custom_call.1} parent=1 // pred_fallthru
      _
    // Predicated region
    $region58: #{tpu_custom_call.1} parent=1 // pred_check
      _
    $region59: #{tpu_custom_call.1} parent=1 // pred_check_branch
      %1804 = sbr.rel (0) target = $region61
    $region60: #{tpu_custom_call.1} parent=1 // pred_region
      %1806 = vsyncadd [#allocation7], 0
      %s1808 = sshll.u32 [#allocation14], 4
      %s1809 = int_to_ptr.vmem [resolvable:$true] %s1808
      %s1810 = sshll.u32 %s7, 4
      %s1811 = int_to_ptr.hbm [resolvable:$true] %s1810
      %1813 = dma.vmem_to_hbm [thread:$0]  %s1809, 192, %s1811, [#allocation7]
    $region61: #{tpu_custom_call.1} parent=1 // pred_fallthru
      _
    // Predicated region
    $region62: #{tpu_custom_call.1} parent=1 // pred_check
      _
    $region63: #{tpu_custom_call.1} parent=1 // pred_check_branch
      %1815 = sbr.rel (0) target = $region65
    $region64: #{tpu_custom_call.1} parent=1 // pred_region
      _
    $region65: #{tpu_custom_call.1} parent=1 // pred_fallthru
      _
    // Predicated region
    $region66: #{tpu_custom_call.1} parent=1 // pred_check
      _
    $region67: #{tpu_custom_call.1} parent=1 // pred_check_branch
      %1817 = sbr.rel (0) target = $region69
    $region68: #{tpu_custom_call.1} parent=1 // pred_region
      %1819 = dma.done [#allocation7], 192
    $region69: #{tpu_custom_call.1} parent=1 // pred_fallthru
      _
    %1820 = vsyncpa [#allocation6], 1
    %1821 = vsyncpa [#allocation9], 1
    %1822 = vsyncpa [#allocation12], 1
    %1823 = vsyncpa [#allocation7], 1

</llo_original>
